<compile_context>
chip_gen: v6e
topology: v6e:2x2x1
jax: 0.10.0
libtpu: 0.0.40
codegen_flags: <defaults>
</compile_context>

<pallas_src>
import functools

import numpy as np
import jax
import jax.numpy as jnp
from jax.experimental import pallas as pl
from jax.experimental.pallas import tpu as pltpu

LN_EPS = 1e-5


def outer_product_kernel(hv_ref, eidx_ref, gamma_ref, beta_ref,
                         w1t_ref, b1_ref, w2t_ref, b2_ref, out_ref,
                         *, gather_mode):
    R, H1 = hv_ref.shape            # R = BB * N rows in this block
    K = eidx_ref.shape[1]
    H2 = w1t_ref.shape[1]

    x = hv_ref[...].astype(jnp.float32)                       # [R, H1]

    # ---- LayerNorm (biased variance, eps=1e-5, elementwise affine), f32 ----
    mean = jnp.mean(x, axis=-1, keepdims=True)
    cen = x - mean
    var = jnp.mean(cen * cen, axis=-1, keepdims=True)
    xn = cen * jax.lax.rsqrt(var + LN_EPS)
    xn = xn * gamma_ref[...] + beta_ref[...]                   # gamma/beta: [1, H2]

    # ---- Linear1: [R, H1] @ [H1, H2] + b1 (low-precision operands, f32 acc) ----
    x1 = jnp.dot(xn.astype(w1t_ref.dtype), w1t_ref[...],
                 preferred_element_type=jnp.float32) + b1_ref[...]      # [R, H2] f32

    # Neighbor indices, made block-local (wrapper passes global row ids).
    base = pl.program_id(0) * R
    idx = eidx_ref[...] - base                                  # [R, K] in [0, R)

    w2t = w2t_ref[...]                                          # [H2, H1]
    b2 = b2_ref[...]                                            # [1, H1]

    if gather_mode == "onehot":
        col_iota = jax.lax.broadcasted_iota(jnp.int32, (R, R), 1)

    # ---- per neighbor: row gather, outer product, Linear2, direct store ----
    for k in range(K):                                          # K small & static
        idx_k = idx[:, k:k + 1]                                 # [R, 1]
        if gather_mode == "take":
            # Direct VMEM row gather (sublane dynamic gather), O(R*H2).
            x_nb = jnp.take_along_axis(
                x1, jnp.broadcast_to(idx_k, (R, H2)), axis=0)   # [R, H2]
        else:
            # Exact fallback: one-hot matmul gather (0/1 matrix, f32).
            onehot_k = (col_iota == idx_k).astype(jnp.float32)  # [R, R]
            x_nb = jnp.dot(onehot_k, x1, preferred_element_type=jnp.float32)
        outer_k = x1 * x_nb                                      # [R, H2] f32
        y_k = jnp.dot(outer_k.astype(w2t.dtype), w2t,
                      preferred_element_type=jnp.float32) + b2   # [R, H1] f32
        # Static, 128-lane-aligned slice store; no loop-carried accumulator.
        out_ref[:, k * H1:(k + 1) * H1] = y_k.astype(out_ref.dtype)


def _pick_batches_per_step(B, N, K, H1, *, row_budget, out_block_bytes):
    """Batches per grid step: biggest 8-aligned tile within budgets, >=2 steps if possible."""
    def fits(bb):
        r = bb * N
        return r <= row_budget and 2 * r * K * H1 * 4 <= out_block_bytes
    divisors = [d for d in range(1, B + 1) if B % d == 0]
    aligned = [d for d in divisors if fits(d) and (d * N) % 8 == 0]
    multi = [d for d in aligned if B // d >= 2]     # >=2 steps: v7x dual-TC + pipelining
    if multi:
        return max(multi)
    if aligned:
        return max(aligned)
    if N % 8 != 0:
        # TODO(synk): pad rows to a multiple of 8 and mask the tail instead of
        # one full-extent (correct but unpipelined) block.
        return B
    return 1


def _build_pallas_call(B, N, K, H1, H2, BB, out_dtype, vmem_limit, gather_mode):
    R = BB * N
    kernel = functools.partial(outer_product_kernel, gather_mode=gather_mode)
    return pl.pallas_call(
        kernel,
        out_shape=jax.ShapeDtypeStruct((B * N, K * H1), out_dtype),
        grid=(B // BB,),
        in_specs=[
            pl.BlockSpec((R, H1), lambda i: (i, 0)),            # h_V rows
            pl.BlockSpec((R, K), lambda i: (i, 0)),             # E_idx (global row ids)
            pl.BlockSpec((1, H2), lambda i: (0, 0)),            # gamma
            pl.BlockSpec((1, H2), lambda i: (0, 0)),            # beta
            pl.BlockSpec((H1, H2), lambda i: (0, 0)),           # W1^T
            pl.BlockSpec((1, H2), lambda i: (0, 0)),            # b1
            pl.BlockSpec((H2, H1), lambda i: (0, 0)),           # W2^T
            pl.BlockSpec((1, H1), lambda i: (0, 0)),            # b2
        ],
        out_specs=pl.BlockSpec((R, K * H1), lambda i: (i, 0)),  # lane-dense output slab
        compiler_params=pltpu.CompilerParams(
            dimension_semantics=("parallel",),
            vmem_limit_bytes=vmem_limit),
    )


def outer_product_forward(h_V, E_idx, params, *,
                          matmul_dtype=jnp.bfloat16,
                          out_dtype=None,
                          gather_mode="auto",
                          row_budget=512,
                          out_block_bytes=8 * 2**20):
    """h_V: [B, N, H1], E_idx: [B, N, K] ints (neighbor indices within each batch)."""
    B, N, H1 = h_V.shape
    K = E_idx.shape[-1]
    H2 = params["w1"].shape[0]
    assert params["w1"].shape[1] == H1
    # The PyTorch module applies LayerNorm(num_hidden2) to an H1-wide tensor.
    assert H1 == H2, "OuterProduct requires num_hidden1 == num_hidden2"
    out_dtype = h_V.dtype if out_dtype is None else out_dtype

    BB = _pick_batches_per_step(B, N, K, H1, row_budget=row_budget,
                                out_block_bytes=out_block_bytes)
    R = BB * N

    gamma = params["gamma"].reshape(1, H2).astype(jnp.float32)
    beta = params["beta"].reshape(1, H2).astype(jnp.float32)
    w1t = params["w1"].T.astype(matmul_dtype)                   # [H1, H2]
    b1 = params["b1"].reshape(1, H2).astype(jnp.float32)
    w2t = params["w2"].T.astype(matmul_dtype)                   # [H2, H1]
    b2 = params["b2"].reshape(1, H1).astype(jnp.float32)

    # Flatten (batch, length) -> rows; neighbor indices become global row ids.
    hv2 = h_V.reshape(B * N, H1)
    eidx2 = (E_idx.astype(jnp.int32)
             + (jnp.arange(B, dtype=jnp.int32) * N)[:, None, None]).reshape(B * N, K)

    # Scoped-VMEM request (kron weight gone): double-buffered I/O + params + temps.
    blk_io = 4 * (R * H1 + R * K + R * K * H1)
    blk_par = 4 * (2 * H1 * H2 + 3 * H2 + H1)
    blk_tmp = 4 * (8 * R * H2 + R * R)      # LN/x1/gather/outer temps (+ one-hot fallback)
    need = 2 * (blk_io + blk_par) + blk_tmp
    vmem_limit = int(min(max(2 * need, 16 * 2**20), 40 * 2**20))

    modes = ("take", "onehot") if gather_mode == "auto" else (gather_mode,)
    err = None
    for mode in modes:
        call = _build_pallas_call(B, N, K, H1, H2, BB, out_dtype, vmem_limit, mode)
        try:
            out2d = call(hv2, eidx2, gamma, beta, w1t, b1, w2t, b2)
            out2d = jax.block_until_ready(out2d)
            return out2d.reshape(B, N, K, H1)
        except Exception as e:  # Mosaic build without sublane dynamic-gather support
            err = e
    raise err


def reference_forward(h_V, E_idx, params):
    """Pure-JAX reference mirroring the PyTorch module."""
    gamma, beta = params["gamma"], params["beta"]
    w1, b1, w2, b2 = params["w1"], params["b1"], params["w2"], params["b2"]
    with jax.default_matmul_precision("float32"):
        mean = h_V.mean(-1, keepdims=True)
        var = ((h_V - mean) ** 2).mean(-1, keepdims=True)
        xn = (h_V - mean) / jnp.sqrt(var + LN_EPS) * gamma + beta
        x1 = xn @ w1.T + b1                                          # [B, N, H2]
        outer = x1[:, :, None, :] * x1[:, None, :, :]                # [B, N, N, H2]
        gathered = jnp.take_along_axis(outer, E_idx[..., None], axis=2)  # [B, N, K, H2]
        return gathered @ w2.T + b2                                  # [B, N, K, H1]


if __name__ == "__main__":
    B, N, K = 4, 16, 8
    H1 = H2 = 128   # LayerNorm(num_hidden2) is applied to h_V -> H1 must equal H2

    key = jax.random.PRNGKey(0)
    k_hv, k_w1, k_b1, k_w2, k_b2, k_g, k_be, k_idx = jax.random.split(key, 8)

    h_V = jax.random.normal(k_hv, (B, N, H1), dtype=jnp.float32)
    E_idx = jax.random.randint(k_idx, (B, N, K), 0, N, dtype=jnp.int32)

    params = {
        "w1": jax.random.normal(k_w1, (H2, H1), dtype=jnp.float32) * 0.1,
        "b1": jax.random.normal(k_b1, (H2,), dtype=jnp.float32) * 0.1,
        "w2": jax.random.normal(k_w2, (H1, H2), dtype=jnp.float32) * 0.1,
        "b2": jax.random.normal(k_b2, (H1,), dtype=jnp.float32) * 0.1,
        "gamma": 1.0 + 0.05 * jax.random.normal(k_g, (H2,), dtype=jnp.float32),
        "beta": 0.05 * jax.random.normal(k_be, (H2,), dtype=jnp.float32),
    }

    ref = jax.block_until_ready(reference_forward(h_V, E_idx, params))

    # Exact-precision path (f32 matmul operands): tight check.
    out_f32 = outer_product_forward(h_V, E_idx, params, matmul_dtype=jnp.float32)
    out_f32 = jax.block_until_ready(out_f32)
    assert out_f32.shape == (B, N, K, H1)
    np.testing.assert_allclose(np.asarray(out_f32), np.asarray(ref),
                               rtol=1e-4, atol=1e-4)

    # Recommended fast path (bf16 matmul operands, f32 accumulation): loose check.
    out_bf16 = jax.block_until_ready(outer_product_forward(h_V, E_idx, params))
    np.testing.assert_allclose(np.asarray(out_bf16), np.asarray(ref),
                               rtol=6e-2, atol=6e-2)

    print("KERNEL_OK")
</pallas_src>

<mosaic_0001>
module attributes {stable_mosaic.version = 11 : i64} {
  func.func @outer_product_kernel(%arg0: i32, %arg1: memref<32x128xf32, #tpu.memory_space<vmem>>, %arg2: memref<32x8xi32, #tpu.memory_space<vmem>>, %arg3: memref<1x128xf32, #tpu.memory_space<vmem>>, %arg4: memref<1x128xf32, #tpu.memory_space<vmem>>, %arg5: memref<128x128xf32, #tpu.memory_space<vmem>>, %arg6: memref<1x128xf32, #tpu.memory_space<vmem>>, %arg7: memref<128x128xf32, #tpu.memory_space<vmem>>, %arg8: memref<1x128xf32, #tpu.memory_space<vmem>>, %arg9: memref<32x1024xf32, #tpu.memory_space<vmem>>) attributes {dimension_semantics = [#tpu.dimension_semantics<parallel>], iteration_bounds = array<i64: 2>, scalar_prefetch = 0 : i64, scratch_operands = 0 : i64, tpu.core_type = #tpu.core_type<tc>, window_params = [{transform_indices = @transform_0, window_bounds = array<i64: 32, 128>}, {transform_indices = @transform_1, window_bounds = array<i64: 32, 8>}, {pipeline_mode = #tpu.pipeline_mode<synchronous>, transform_indices = @transform_2, window_bounds = array<i64: 1, 128>}, {pipeline_mode = #tpu.pipeline_mode<synchronous>, transform_indices = @transform_3, window_bounds = array<i64: 1, 128>}, {pipeline_mode = #tpu.pipeline_mode<synchronous>, transform_indices = @transform_4, window_bounds = array<i64: 128, 128>}, {pipeline_mode = #tpu.pipeline_mode<synchronous>, transform_indices = @transform_5, window_bounds = array<i64: 1, 128>}, {pipeline_mode = #tpu.pipeline_mode<synchronous>, transform_indices = @transform_6, window_bounds = array<i64: 128, 128>}, {pipeline_mode = #tpu.pipeline_mode<synchronous>, transform_indices = @transform_7, window_bounds = array<i64: 1, 128>}, {transform_indices = @transform_8, window_bounds = array<i64: 32, 1024>}]} {
    %c0 = arith.constant 0 : index
    %c0_0 = arith.constant 0 : index
    %0 = vector.load %arg1[%c0, %c0_0] : memref<32x128xf32, #tpu.memory_space<vmem>>, vector<32x128xf32>
    %cst = arith.constant dense<0.000000e+00> : vector<32xf32>
    %1 = vector.multi_reduction <add>, %0, %cst [1] : vector<32x128xf32> to vector<32xf32>
    %2 = vector.shape_cast %1 : vector<32xf32> to vector<32x1xf32>
    %cst_1 = arith.constant 1.280000e+02 : f32
    %3 = vector.broadcast %cst_1 : f32 to vector<32x1xf32>
    %4 = arith.divf %2, %3 : vector<32x1xf32>
    %5 = vector.broadcast %4 : vector<32x1xf32> to vector<32x128xf32>
    %6 = arith.subf %0, %5 : vector<32x128xf32>
    %7 = arith.mulf %6, %6 : vector<32x128xf32>
    %cst_2 = arith.constant dense<0.000000e+00> : vector<32xf32>
    %8 = vector.multi_reduction <add>, %7, %cst_2 [1] : vector<32x128xf32> to vector<32xf32>
    %9 = vector.shape_cast %8 : vector<32xf32> to vector<32x1xf32>
    %cst_3 = arith.constant 1.280000e+02 : f32
    %10 = vector.broadcast %cst_3 : f32 to vector<32x1xf32>
    %11 = arith.divf %9, %10 : vector<32x1xf32>
    %cst_4 = arith.constant 9.99999974E-6 : f32
    %12 = vector.broadcast %cst_4 : f32 to vector<32x1xf32>
    %13 = arith.addf %11, %12 : vector<32x1xf32>
    %14 = math.rsqrt %13 : vector<32x1xf32>
    %15 = vector.broadcast %14 : vector<32x1xf32> to vector<32x128xf32>
    %16 = arith.mulf %6, %15 : vector<32x128xf32>
    %c0_5 = arith.constant 0 : index
    %c0_6 = arith.constant 0 : index
    %17 = vector.load %arg3[%c0_5, %c0_6] : memref<1x128xf32, #tpu.memory_space<vmem>>, vector<1x128xf32>
    %18 = vector.broadcast %17 : vector<1x128xf32> to vector<32x128xf32>
    %19 = arith.mulf %16, %18 : vector<32x128xf32>
    %c0_7 = arith.constant 0 : index
    %c0_8 = arith.constant 0 : index
    %20 = vector.load %arg4[%c0_7, %c0_8] : memref<1x128xf32, #tpu.memory_space<vmem>>, vector<1x128xf32>
    %21 = vector.broadcast %20 : vector<1x128xf32> to vector<32x128xf32>
    %22 = arith.addf %19, %21 : vector<32x128xf32>
    %c0_9 = arith.constant 0 : index
    %c0_10 = arith.constant 0 : index
    %23 = vector.load %arg5[%c0_9, %c0_10] : memref<128x128xf32, #tpu.memory_space<vmem>>, vector<128x128xf32>
    %cst_11 = arith.constant dense<0.000000e+00> : vector<32x128xf32>
    %24 = tpu.matmul %22, %23, %cst_11 {dimension_numbers = #tpu.dot_dimension_numbers<[1], [0], [0], [1], [0, 0, 1, 1], [], []>} : vector<32x128xf32>, vector<128x128xf32>, vector<32x128xf32> -> vector<32x128xf32>
    %c0_12 = arith.constant 0 : index
    %c0_13 = arith.constant 0 : index
    %25 = vector.load %arg6[%c0_12, %c0_13] : memref<1x128xf32, #tpu.memory_space<vmem>>, vector<1x128xf32>
    %26 = vector.broadcast %25 : vector<1x128xf32> to vector<32x128xf32>
    %27 = arith.addf %24, %26 : vector<32x128xf32>
    %c32_i32 = arith.constant 32 : i32
    %28 = arith.muli %arg0, %c32_i32 : i32
    %c0_14 = arith.constant 0 : index
    %c0_15 = arith.constant 0 : index
    %29 = vector.load %arg2[%c0_14, %c0_15] : memref<32x8xi32, #tpu.memory_space<vmem>>, vector<32x8xi32>
    %30 = vector.broadcast %28 : i32 to vector<32x8xi32>
    %31 = arith.subi %29, %30 : vector<32x8xi32>
    %c0_16 = arith.constant 0 : index
    %c0_17 = arith.constant 0 : index
    %32 = vector.load %arg7[%c0_16, %c0_17] : memref<128x128xf32, #tpu.memory_space<vmem>>, vector<128x128xf32>
    %c0_18 = arith.constant 0 : index
    %c0_19 = arith.constant 0 : index
    %33 = vector.load %arg8[%c0_18, %c0_19] : memref<1x128xf32, #tpu.memory_space<vmem>>, vector<1x128xf32>
    %34 = vector.extract_strided_slice %31 {offsets = [0, 0], sizes = [32, 1], strides = [1, 1]} : vector<32x8xi32> to vector<32x1xi32>
    %35 = vector.shape_cast %34 : vector<32x1xi32> to vector<32x1xi32>
    %36 = vector.broadcast %35 : vector<32x1xi32> to vector<32x128xi32>
    %c0_i32 = arith.constant 0 : i32
    %37 = vector.broadcast %c0_i32 : i32 to vector<32x128xi32>
    %38 = arith.cmpi slt, %36, %37 : vector<32x128xi32>
    %c32_i32_20 = arith.constant 32 : i32
    %39 = vector.broadcast %c32_i32_20 : i32 to vector<32x128xi32>
    %40 = arith.addi %36, %39 : vector<32x128xi32>
    %41 = arith.select %38, %40, %36 : vector<32x128xi1>, vector<32x128xi32>
    %42 = vector.shape_cast %41 : vector<32x128xi32> to vector<32x128x1xi32>
    %43 = vector.shape_cast %42 : vector<32x128x1xi32> to vector<32x128xi32>
    %44 = tpu.dynamic_gather %27[%43] in [0] : vector<32x128xf32>, vector<32x128xi32> -> vector<32x128xf32>
    %45 = arith.mulf %27, %44 : vector<32x128xf32>
    %cst_21 = arith.constant dense<0.000000e+00> : vector<32x128xf32>
    %46 = tpu.matmul %45, %32, %cst_21 {dimension_numbers = #tpu.dot_dimension_numbers<[1], [0], [0], [1], [0, 0, 1, 1], [], []>} : vector<32x128xf32>, vector<128x128xf32>, vector<32x128xf32> -> vector<32x128xf32>
    %47 = vector.broadcast %33 : vector<1x128xf32> to vector<32x128xf32>
    %48 = arith.addf %46, %47 : vector<32x128xf32>
    %c0_22 = arith.constant 0 : index
    %c0_23 = arith.constant 0 : index
    %49 = vector.load %arg9[%c0_22, %c0_23] : memref<32x1024xf32, #tpu.memory_space<vmem>>, vector<32x128xf32>
    tpu.vector_store %arg9[%c0_22, %c0_23], %48 {strides = array<i32>} : memref<32x1024xf32, #tpu.memory_space<vmem>>, vector<32x128xf32>,
    %50 = vector.extract_strided_slice %31 {offsets = [0, 1], sizes = [32, 1], strides = [1, 1]} : vector<32x8xi32> to vector<32x1xi32>
    %51 = vector.shape_cast %50 : vector<32x1xi32> to vector<32x1xi32>
    %52 = vector.broadcast %51 : vector<32x1xi32> to vector<32x128xi32>
    %c0_i32_24 = arith.constant 0 : i32
    %53 = vector.broadcast %c0_i32_24 : i32 to vector<32x128xi32>
    %54 = arith.cmpi slt, %52, %53 : vector<32x128xi32>
    %c32_i32_25 = arith.constant 32 : i32
    %55 = vector.broadcast %c32_i32_25 : i32 to vector<32x128xi32>
    %56 = arith.addi %52, %55 : vector<32x128xi32>
    %57 = arith.select %54, %56, %52 : vector<32x128xi1>, vector<32x128xi32>
    %58 = vector.shape_cast %57 : vector<32x128xi32> to vector<32x128x1xi32>
    %59 = vector.shape_cast %58 : vector<32x128x1xi32> to vector<32x128xi32>
    %60 = tpu.dynamic_gather %27[%59] in [0] : vector<32x128xf32>, vector<32x128xi32> -> vector<32x128xf32>
    %61 = arith.mulf %27, %60 : vector<32x128xf32>
    %cst_26 = arith.constant dense<0.000000e+00> : vector<32x128xf32>
    %62 = tpu.matmul %61, %32, %cst_26 {dimension_numbers = #tpu.dot_dimension_numbers<[1], [0], [0], [1], [0, 0, 1, 1], [], []>} : vector<32x128xf32>, vector<128x128xf32>, vector<32x128xf32> -> vector<32x128xf32>
    %63 = vector.broadcast %33 : vector<1x128xf32> to vector<32x128xf32>
    %64 = arith.addf %62, %63 : vector<32x128xf32>
    %c0_27 = arith.constant 0 : index
    %c128 = arith.constant 128 : index
    %65 = vector.load %arg9[%c0_27, %c128] : memref<32x1024xf32, #tpu.memory_space<vmem>>, vector<32x128xf32>
    tpu.vector_store %arg9[%c0_27, %c128], %64 {strides = array<i32>} : memref<32x1024xf32, #tpu.memory_space<vmem>>, vector<32x128xf32>,
    %66 = vector.extract_strided_slice %31 {offsets = [0, 2], sizes = [32, 1], strides = [1, 1]} : vector<32x8xi32> to vector<32x1xi32>
    %67 = vector.shape_cast %66 : vector<32x1xi32> to vector<32x1xi32>
    %68 = vector.broadcast %67 : vector<32x1xi32> to vector<32x128xi32>
    %c0_i32_28 = arith.constant 0 : i32
    %69 = vector.broadcast %c0_i32_28 : i32 to vector<32x128xi32>
    %70 = arith.cmpi slt, %68, %69 : vector<32x128xi32>
    %c32_i32_29 = arith.constant 32 : i32
    %71 = vector.broadcast %c32_i32_29 : i32 to vector<32x128xi32>
    %72 = arith.addi %68, %71 : vector<32x128xi32>
    %73 = arith.select %70, %72, %68 : vector<32x128xi1>, vector<32x128xi32>
    %74 = vector.shape_cast %73 : vector<32x128xi32> to vector<32x128x1xi32>
    %75 = vector.shape_cast %74 : vector<32x128x1xi32> to vector<32x128xi32>
    %76 = tpu.dynamic_gather %27[%75] in [0] : vector<32x128xf32>, vector<32x128xi32> -> vector<32x128xf32>
    %77 = arith.mulf %27, %76 : vector<32x128xf32>
    %cst_30 = arith.constant dense<0.000000e+00> : vector<32x128xf32>
    %78 = tpu.matmul %77, %32, %cst_30 {dimension_numbers = #tpu.dot_dimension_numbers<[1], [0], [0], [1], [0, 0, 1, 1], [], []>} : vector<32x128xf32>, vector<128x128xf32>, vector<32x128xf32> -> vector<32x128xf32>
    %79 = vector.broadcast %33 : vector<1x128xf32> to vector<32x128xf32>
    %80 = arith.addf %78, %79 : vector<32x128xf32>
    %c0_31 = arith.constant 0 : index
    %c256 = arith.constant 256 : index
    %81 = vector.load %arg9[%c0_31, %c256] : memref<32x1024xf32, #tpu.memory_space<vmem>>, vector<32x128xf32>
    tpu.vector_store %arg9[%c0_31, %c256], %80 {strides = array<i32>} : memref<32x1024xf32, #tpu.memory_space<vmem>>, vector<32x128xf32>,
    %82 = vector.extract_strided_slice %31 {offsets = [0, 3], sizes = [32, 1], strides = [1, 1]} : vector<32x8xi32> to vector<32x1xi32>
    %83 = vector.shape_cast %82 : vector<32x1xi32> to vector<32x1xi32>
    %84 = vector.broadcast %83 : vector<32x1xi32> to vector<32x128xi32>
    %c0_i32_32 = arith.constant 0 : i32
    %85 = vector.broadcast %c0_i32_32 : i32 to vector<32x128xi32>
    %86 = arith.cmpi slt, %84, %85 : vector<32x128xi32>
    %c32_i32_33 = arith.constant 32 : i32
    %87 = vector.broadcast %c32_i32_33 : i32 to vector<32x128xi32>
    %88 = arith.addi %84, %87 : vector<32x128xi32>
    %89 = arith.select %86, %88, %84 : vector<32x128xi1>, vector<32x128xi32>
    %90 = vector.shape_cast %89 : vector<32x128xi32> to vector<32x128x1xi32>
    %91 = vector.shape_cast %90 : vector<32x128x1xi32> to vector<32x128xi32>
    %92 = tpu.dynamic_gather %27[%91] in [0] : vector<32x128xf32>, vector<32x128xi32> -> vector<32x128xf32>
    %93 = arith.mulf %27, %92 : vector<32x128xf32>
    %cst_34 = arith.constant dense<0.000000e+00> : vector<32x128xf32>
    %94 = tpu.matmul %93, %32, %cst_34 {dimension_numbers = #tpu.dot_dimension_numbers<[1], [0], [0], [1], [0, 0, 1, 1], [], []>} : vector<32x128xf32>, vector<128x128xf32>, vector<32x128xf32> -> vector<32x128xf32>
    %95 = vector.broadcast %33 : vector<1x128xf32> to vector<32x128xf32>
    %96 = arith.addf %94, %95 : vector<32x128xf32>
    %c0_35 = arith.constant 0 : index
    %c384 = arith.constant 384 : index
    %97 = vector.load %arg9[%c0_35, %c384] : memref<32x1024xf32, #tpu.memory_space<vmem>>, vector<32x128xf32>
    tpu.vector_store %arg9[%c0_35, %c384], %96 {strides = array<i32>} : memref<32x1024xf32, #tpu.memory_space<vmem>>, vector<32x128xf32>,
    %98 = vector.extract_strided_slice %31 {offsets = [0, 4], sizes = [32, 1], strides = [1, 1]} : vector<32x8xi32> to vector<32x1xi32>
    %99 = vector.shape_cast %98 : vector<32x1xi32> to vector<32x1xi32>
    %100 = vector.broadcast %99 : vector<32x1xi32> to vector<32x128xi32>
    %c0_i32_36 = arith.constant 0 : i32
    %101 = vector.broadcast %c0_i32_36 : i32 to vector<32x128xi32>
    %102 = arith.cmpi slt, %100, %101 : vector<32x128xi32>
    %c32_i32_37 = arith.constant 32 : i32
    %103 = vector.broadcast %c32_i32_37 : i32 to vector<32x128xi32>
    %104 = arith.addi %100, %103 : vector<32x128xi32>
    %105 = arith.select %102, %104, %100 : vector<32x128xi1>, vector<32x128xi32>
    %106 = vector.shape_cast %105 : vector<32x128xi32> to vector<32x128x1xi32>
    %107 = vector.shape_cast %106 : vector<32x128x1xi32> to vector<32x128xi32>
    %108 = tpu.dynamic_gather %27[%107] in [0] : vector<32x128xf32>, vector<32x128xi32> -> vector<32x128xf32>
    %109 = arith.mulf %27, %108 : vector<32x128xf32>
    %cst_38 = arith.constant dense<0.000000e+00> : vector<32x128xf32>
    %110 = tpu.matmul %109, %32, %cst_38 {dimension_numbers = #tpu.dot_dimension_numbers<[1], [0], [0], [1], [0, 0, 1, 1], [], []>} : vector<32x128xf32>, vector<128x128xf32>, vector<32x128xf32> -> vector<32x128xf32>
    %111 = vector.broadcast %33 : vector<1x128xf32> to vector<32x128xf32>
    %112 = arith.addf %110, %111 : vector<32x128xf32>
    %c0_39 = arith.constant 0 : index
    %c512 = arith.constant 512 : index
    %113 = vector.load %arg9[%c0_39, %c512] : memref<32x1024xf32, #tpu.memory_space<vmem>>, vector<32x128xf32>
    tpu.vector_store %arg9[%c0_39, %c512], %112 {strides = array<i32>} : memref<32x1024xf32, #tpu.memory_space<vmem>>, vector<32x128xf32>,
    %114 = vector.extract_strided_slice %31 {offsets = [0, 5], sizes = [32, 1], strides = [1, 1]} : vector<32x8xi32> to vector<32x1xi32>
    %115 = vector.shape_cast %114 : vector<32x1xi32> to vector<32x1xi32>
    %116 = vector.broadcast %115 : vector<32x1xi32> to vector<32x128xi32>
    %c0_i32_40 = arith.constant 0 : i32
    %117 = vector.broadcast %c0_i32_40 : i32 to vector<32x128xi32>
    %118 = arith.cmpi slt, %116, %117 : vector<32x128xi32>
    %c32_i32_41 = arith.constant 32 : i32
    %119 = vector.broadcast %c32_i32_41 : i32 to vector<32x128xi32>
    %120 = arith.addi %116, %119 : vector<32x128xi32>
    %121 = arith.select %118, %120, %116 : vector<32x128xi1>, vector<32x128xi32>
    %122 = vector.shape_cast %121 : vector<32x128xi32> to vector<32x128x1xi32>
    %123 = vector.shape_cast %122 : vector<32x128x1xi32> to vector<32x128xi32>
    %124 = tpu.dynamic_gather %27[%123] in [0] : vector<32x128xf32>, vector<32x128xi32> -> vector<32x128xf32>
    %125 = arith.mulf %27, %124 : vector<32x128xf32>
    %cst_42 = arith.constant dense<0.000000e+00> : vector<32x128xf32>
    %126 = tpu.matmul %125, %32, %cst_42 {dimension_numbers = #tpu.dot_dimension_numbers<[1], [0], [0], [1], [0, 0, 1, 1], [], []>} : vector<32x128xf32>, vector<128x128xf32>, vector<32x128xf32> -> vector<32x128xf32>
    %127 = vector.broadcast %33 : vector<1x128xf32> to vector<32x128xf32>
    %128 = arith.addf %126, %127 : vector<32x128xf32>
    %c0_43 = arith.constant 0 : index
    %c640 = arith.constant 640 : index
    %129 = vector.load %arg9[%c0_43, %c640] : memref<32x1024xf32, #tpu.memory_space<vmem>>, vector<32x128xf32>
    tpu.vector_store %arg9[%c0_43, %c640], %128 {strides = array<i32>} : memref<32x1024xf32, #tpu.memory_space<vmem>>, vector<32x128xf32>,
    %130 = vector.extract_strided_slice %31 {offsets = [0, 6], sizes = [32, 1], strides = [1, 1]} : vector<32x8xi32> to vector<32x1xi32>
    %131 = vector.shape_cast %130 : vector<32x1xi32> to vector<32x1xi32>
    %132 = vector.broadcast %131 : vector<32x1xi32> to vector<32x128xi32>
    %c0_i32_44 = arith.constant 0 : i32
    %133 = vector.broadcast %c0_i32_44 : i32 to vector<32x128xi32>
    %134 = arith.cmpi slt, %132, %133 : vector<32x128xi32>
    %c32_i32_45 = arith.constant 32 : i32
    %135 = vector.broadcast %c32_i32_45 : i32 to vector<32x128xi32>
    %136 = arith.addi %132, %135 : vector<32x128xi32>
    %137 = arith.select %134, %136, %132 : vector<32x128xi1>, vector<32x128xi32>
    %138 = vector.shape_cast %137 : vector<32x128xi32> to vector<32x128x1xi32>
    %139 = vector.shape_cast %138 : vector<32x128x1xi32> to vector<32x128xi32>
    %140 = tpu.dynamic_gather %27[%139] in [0] : vector<32x128xf32>, vector<32x128xi32> -> vector<32x128xf32>
    %141 = arith.mulf %27, %140 : vector<32x128xf32>
    %cst_46 = arith.constant dense<0.000000e+00> : vector<32x128xf32>
    %142 = tpu.matmul %141, %32, %cst_46 {dimension_numbers = #tpu.dot_dimension_numbers<[1], [0], [0], [1], [0, 0, 1, 1], [], []>} : vector<32x128xf32>, vector<128x128xf32>, vector<32x128xf32> -> vector<32x128xf32>
    %143 = vector.broadcast %33 : vector<1x128xf32> to vector<32x128xf32>
    %144 = arith.addf %142, %143 : vector<32x128xf32>
    %c0_47 = arith.constant 0 : index
    %c768 = arith.constant 768 : index
    %145 = vector.load %arg9[%c0_47, %c768] : memref<32x1024xf32, #tpu.memory_space<vmem>>, vector<32x128xf32>
    tpu.vector_store %arg9[%c0_47, %c768], %144 {strides = array<i32>} : memref<32x1024xf32, #tpu.memory_space<vmem>>, vector<32x128xf32>,
    %146 = vector.extract_strided_slice %31 {offsets = [0, 7], sizes = [32, 1], strides = [1, 1]} : vector<32x8xi32> to vector<32x1xi32>
    %147 = vector.shape_cast %146 : vector<32x1xi32> to vector<32x1xi32>
    %148 = vector.broadcast %147 : vector<32x1xi32> to vector<32x128xi32>
    %c0_i32_48 = arith.constant 0 : i32
    %149 = vector.broadcast %c0_i32_48 : i32 to vector<32x128xi32>
    %150 = arith.cmpi slt, %148, %149 : vector<32x128xi32>
    %c32_i32_49 = arith.constant 32 : i32
    %151 = vector.broadcast %c32_i32_49 : i32 to vector<32x128xi32>
    %152 = arith.addi %148, %151 : vector<32x128xi32>
    %153 = arith.select %150, %152, %148 : vector<32x128xi1>, vector<32x128xi32>
    %154 = vector.shape_cast %153 : vector<32x128xi32> to vector<32x128x1xi32>
    %155 = vector.shape_cast %154 : vector<32x128x1xi32> to vector<32x128xi32>
    %156 = tpu.dynamic_gather %27[%155] in [0] : vector<32x128xf32>, vector<32x128xi32> -> vector<32x128xf32>
    %157 = arith.mulf %27, %156 : vector<32x128xf32>
    %cst_50 = arith.constant dense<0.000000e+00> : vector<32x128xf32>
    %158 = tpu.matmul %157, %32, %cst_50 {dimension_numbers = #tpu.dot_dimension_numbers<[1], [0], [0], [1], [0, 0, 1, 1], [], []>} : vector<32x128xf32>, vector<128x128xf32>, vector<32x128xf32> -> vector<32x128xf32>
    %159 = vector.broadcast %33 : vector<1x128xf32> to vector<32x128xf32>
    %160 = arith.addf %158, %159 : vector<32x128xf32>
    %c0_51 = arith.constant 0 : index
    %c896 = arith.constant 896 : index
    %161 = vector.load %arg9[%c0_51, %c896] : memref<32x1024xf32, #tpu.memory_space<vmem>>, vector<32x128xf32>
    tpu.vector_store %arg9[%c0_51, %c896], %160 {strides = array<i32>} : memref<32x1024xf32, #tpu.memory_space<vmem>>, vector<32x128xf32>,
    return
  }
  func.func @transform_0(%arg0: i32) -> (i32, i32) {
    %c0_i32 = arith.constant 0 : i32
    %c0_i32_0 = arith.constant 0 : i32
    return %arg0, %c0_i32 : i32, i32
  }
  func.func @transform_1(%arg0: i32) -> (i32, i32) {
    %c0_i32 = arith.constant 0 : i32
    %c0_i32_0 = arith.constant 0 : i32
    return %arg0, %c0_i32 : i32, i32
  }
  func.func @transform_2(%arg0: i32) -> (i32, i32) {
    %c0_i32 = arith.constant 0 : i32
    %c0_i32_0 = arith.constant 0 : i32
    %c0_i32_1 = arith.constant 0 : i32
    return %c0_i32, %c0_i32_0 : i32, i32
  }
  func.func @transform_3(%arg0: i32) -> (i32, i32) {
    %c0_i32 = arith.constant 0 : i32
    %c0_i32_0 = arith.constant 0 : i32
    %c0_i32_1 = arith.constant 0 : i32
    return %c0_i32, %c0_i32_0 : i32, i32
  }
  func.func @transform_4(%arg0: i32) -> (i32, i32) {
    %c0_i32 = arith.constant 0 : i32
    %c0_i32_0 = arith.constant 0 : i32
    %c0_i32_1 = arith.constant 0 : i32
    return %c0_i32, %c0_i32_0 : i32, i32
  }
  func.func @transform_5(%arg0: i32) -> (i32, i32) {
    %c0_i32 = arith.constant 0 : i32
    %c0_i32_0 = arith.constant 0 : i32
    %c0_i32_1 = arith.constant 0 : i32
    return %c0_i32, %c0_i32_0 : i32, i32
  }
  func.func @transform_6(%arg0: i32) -> (i32, i32) {
    %c0_i32 = arith.constant 0 : i32
    %c0_i32_0 = arith.constant 0 : i32
    %c0_i32_1 = arith.constant 0 : i32
    return %c0_i32, %c0_i32_0 : i32, i32
  }
  func.func @transform_7(%arg0: i32) -> (i32, i32) {
    %c0_i32 = arith.constant 0 : i32
    %c0_i32_0 = arith.constant 0 : i32
    %c0_i32_1 = arith.constant 0 : i32
    return %c0_i32, %c0_i32_0 : i32, i32
  }
  func.func @transform_8(%arg0: i32) -> (i32, i32) {
    %c0_i32 = arith.constant 0 : i32
    %c0_i32_0 = arith.constant 0 : i32
    return %arg0, %c0_i32 : i32, i32
  }
}

module attributes {stable_mosaic.version = 11 : i64} {
  func.func @outer_product_kernel(%arg0: i32, %arg1: memref<32x128xf32, #tpu.memory_space<vmem>>, %arg2: memref<32x8xi32, #tpu.memory_space<vmem>>, %arg3: memref<1x128xf32, #tpu.memory_space<vmem>>, %arg4: memref<1x128xf32, #tpu.memory_space<vmem>>, %arg5: memref<128x128xf32, #tpu.memory_space<vmem>>, %arg6: memref<1x128xf32, #tpu.memory_space<vmem>>, %arg7: memref<128x128xf32, #tpu.memory_space<vmem>>, %arg8: memref<1x128xf32, #tpu.memory_space<vmem>>, %arg9: memref<32x1024xf32, #tpu.memory_space<vmem>>) attributes {dimension_semantics = [#tpu.dimension_semantics<parallel>], iteration_bounds = array<i64: 2>, scalar_prefetch = 0 : i64, scratch_operands = 0 : i64, tpu.core_type = #tpu.core_type<tc>, window_params = [{transform_indices = @transform_0, window_bounds = array<i64: 32, 128>}, {transform_indices = @transform_1, window_bounds = array<i64: 32, 8>}, {pipeline_mode = #tpu.pipeline_mode<synchronous>, transform_indices = @transform_2, window_bounds = array<i64: 1, 128>}, {pipeline_mode = #tpu.pipeline_mode<synchronous>, transform_indices = @transform_3, window_bounds = array<i64: 1, 128>}, {pipeline_mode = #tpu.pipeline_mode<synchronous>, transform_indices = @transform_4, window_bounds = array<i64: 128, 128>}, {pipeline_mode = #tpu.pipeline_mode<synchronous>, transform_indices = @transform_5, window_bounds = array<i64: 1, 128>}, {pipeline_mode = #tpu.pipeline_mode<synchronous>, transform_indices = @transform_6, window_bounds = array<i64: 128, 128>}, {pipeline_mode = #tpu.pipeline_mode<synchronous>, transform_indices = @transform_7, window_bounds = array<i64: 1, 128>}, {transform_indices = @transform_8, window_bounds = array<i64: 32, 1024>}]} {
    %c0 = arith.constant 0 : index
    %c0_0 = arith.constant 0 : index
    %0 = vector.load %arg1[%c0, %c0_0] : memref<32x128xf32, #tpu.memory_space<vmem>>, vector<32x128xf32>
    %cst = arith.constant dense<0.000000e+00> : vector<32xf32>
    %1 = vector.multi_reduction <add>, %0, %cst [1] : vector<32x128xf32> to vector<32xf32>
    %2 = vector.shape_cast %1 : vector<32xf32> to vector<32x1xf32>
    %cst_1 = arith.constant 1.280000e+02 : f32
    %3 = vector.broadcast %cst_1 : f32 to vector<32x1xf32>
    %4 = arith.divf %2, %3 : vector<32x1xf32>
    %5 = vector.broadcast %4 : vector<32x1xf32> to vector<32x128xf32>
    %6 = arith.subf %0, %5 : vector<32x128xf32>
    %7 = arith.mulf %6, %6 : vector<32x128xf32>
    %cst_2 = arith.constant dense<0.000000e+00> : vector<32xf32>
    %8 = vector.multi_reduction <add>, %7, %cst_2 [1] : vector<32x128xf32> to vector<32xf32>
    %9 = vector.shape_cast %8 : vector<32xf32> to vector<32x1xf32>
    %cst_3 = arith.constant 1.280000e+02 : f32
    %10 = vector.broadcast %cst_3 : f32 to vector<32x1xf32>
    %11 = arith.divf %9, %10 : vector<32x1xf32>
    %cst_4 = arith.constant 9.99999974E-6 : f32
    %12 = vector.broadcast %cst_4 : f32 to vector<32x1xf32>
    %13 = arith.addf %11, %12 : vector<32x1xf32>
    %14 = math.rsqrt %13 : vector<32x1xf32>
    %15 = vector.broadcast %14 : vector<32x1xf32> to vector<32x128xf32>
    %16 = arith.mulf %6, %15 : vector<32x128xf32>
    %c0_5 = arith.constant 0 : index
    %c0_6 = arith.constant 0 : index
    %17 = vector.load %arg3[%c0_5, %c0_6] : memref<1x128xf32, #tpu.memory_space<vmem>>, vector<1x128xf32>
    %18 = vector.broadcast %17 : vector<1x128xf32> to vector<32x128xf32>
    %19 = arith.mulf %16, %18 : vector<32x128xf32>
    %c0_7 = arith.constant 0 : index
    %c0_8 = arith.constant 0 : index
    %20 = vector.load %arg4[%c0_7, %c0_8] : memref<1x128xf32, #tpu.memory_space<vmem>>, vector<1x128xf32>
    %21 = vector.broadcast %20 : vector<1x128xf32> to vector<32x128xf32>
    %22 = arith.addf %19, %21 : vector<32x128xf32>
    %c0_9 = arith.constant 0 : index
    %c0_10 = arith.constant 0 : index
    %23 = vector.load %arg5[%c0_9, %c0_10] : memref<128x128xf32, #tpu.memory_space<vmem>>, vector<128x128xf32>
    %cst_11 = arith.constant dense<0.000000e+00> : vector<32x128xf32>
    %24 = tpu.matmul %22, %23, %cst_11 {dimension_numbers = #tpu.dot_dimension_numbers<[1], [0], [0], [1], [0, 0, 1, 1], [], []>} : vector<32x128xf32>, vector<128x128xf32>, vector<32x128xf32> -> vector<32x128xf32>
    %c0_12 = arith.constant 0 : index
    %c0_13 = arith.constant 0 : index
    %25 = vector.load %arg6[%c0_12, %c0_13] : memref<1x128xf32, #tpu.memory_space<vmem>>, vector<1x128xf32>
    %26 = vector.broadcast %25 : vector<1x128xf32> to vector<32x128xf32>
    %27 = arith.addf %24, %26 : vector<32x128xf32>
    %c32_i32 = arith.constant 32 : i32
    %28 = arith.muli %arg0, %c32_i32 : i32
    %c0_14 = arith.constant 0 : index
    %c0_15 = arith.constant 0 : index
    %29 = vector.load %arg2[%c0_14, %c0_15] : memref<32x8xi32, #tpu.memory_space<vmem>>, vector<32x8xi32>
    %30 = vector.broadcast %28 : i32 to vector<32x8xi32>
    %31 = arith.subi %29, %30 : vector<32x8xi32>
    %c0_16 = arith.constant 0 : index
    %c0_17 = arith.constant 0 : index
    %32 = vector.load %arg7[%c0_16, %c0_17] : memref<128x128xf32, #tpu.memory_space<vmem>>, vector<128x128xf32>
    %c0_18 = arith.constant 0 : index
    %c0_19 = arith.constant 0 : index
    %33 = vector.load %arg8[%c0_18, %c0_19] : memref<1x128xf32, #tpu.memory_space<vmem>>, vector<1x128xf32>
    %34 = tpu.iota {dimensions = array<i32: 1>} : vector<32x32xi32>
    %35 = vector.extract_strided_slice %31 {offsets = [0, 0], sizes = [32, 1], strides = [1, 1]} : vector<32x8xi32> to vector<32x1xi32>
    %36 = vector.broadcast %35 : vector<32x1xi32> to vector<32x32xi32>
    %37 = arith.cmpi eq, %34, %36 : vector<32x32xi32>
    %38 = arith.extui %37 : vector<32x32xi1> to vector<32x32xi32>
    %39 = arith.sitofp %38 : vector<32x32xi32> to vector<32x32xf32>
    %cst_20 = arith.constant dense<0.000000e+00> : vector<32x128xf32>
    %40 = tpu.matmul %39, %27, %cst_20 {dimension_numbers = #tpu.dot_dimension_numbers<[1], [0], [0], [1], [0, 0, 1, 1], [], []>} : vector<32x32xf32>, vector<32x128xf32>, vector<32x128xf32> -> vector<32x128xf32>
    %41 = arith.mulf %27, %40 : vector<32x128xf32>
    %cst_21 = arith.constant dense<0.000000e+00> : vector<32x128xf32>
    %42 = tpu.matmul %41, %32, %cst_21 {dimension_numbers = #tpu.dot_dimension_numbers<[1], [0], [0], [1], [0, 0, 1, 1], [], []>} : vector<32x128xf32>, vector<128x128xf32>, vector<32x128xf32> -> vector<32x128xf32>
    %43 = vector.broadcast %33 : vector<1x128xf32> to vector<32x128xf32>
    %44 = arith.addf %42, %43 : vector<32x128xf32>
    %c0_22 = arith.constant 0 : index
    %c0_23 = arith.constant 0 : index
    %45 = vector.load %arg9[%c0_22, %c0_23] : memref<32x1024xf32, #tpu.memory_space<vmem>>, vector<32x128xf32>
    tpu.vector_store %arg9[%c0_22, %c0_23], %44 {strides = array<i32>} : memref<32x1024xf32, #tpu.memory_space<vmem>>, vector<32x128xf32>,
    %46 = vector.extract_strided_slice %31 {offsets = [0, 1], sizes = [32, 1], strides = [1, 1]} : vector<32x8xi32> to vector<32x1xi32>
    %47 = vector.broadcast %46 : vector<32x1xi32> to vector<32x32xi32>
    %48 = arith.cmpi eq, %34, %47 : vector<32x32xi32>
    %49 = arith.extui %48 : vector<32x32xi1> to vector<32x32xi32>
    %50 = arith.sitofp %49 : vector<32x32xi32> to vector<32x32xf32>
    %cst_24 = arith.constant dense<0.000000e+00> : vector<32x128xf32>
    %51 = tpu.matmul %50, %27, %cst_24 {dimension_numbers = #tpu.dot_dimension_numbers<[1], [0], [0], [1], [0, 0, 1, 1], [], []>} : vector<32x32xf32>, vector<32x128xf32>, vector<32x128xf32> -> vector<32x128xf32>
    %52 = arith.mulf %27, %51 : vector<32x128xf32>
    %cst_25 = arith.constant dense<0.000000e+00> : vector<32x128xf32>
    %53 = tpu.matmul %52, %32, %cst_25 {dimension_numbers = #tpu.dot_dimension_numbers<[1], [0], [0], [1], [0, 0, 1, 1], [], []>} : vector<32x128xf32>, vector<128x128xf32>, vector<32x128xf32> -> vector<32x128xf32>
    %54 = vector.broadcast %33 : vector<1x128xf32> to vector<32x128xf32>
    %55 = arith.addf %53, %54 : vector<32x128xf32>
    %c0_26 = arith.constant 0 : index
    %c128 = arith.constant 128 : index
    %56 = vector.load %arg9[%c0_26, %c128] : memref<32x1024xf32, #tpu.memory_space<vmem>>, vector<32x128xf32>
    tpu.vector_store %arg9[%c0_26, %c128], %55 {strides = array<i32>} : memref<32x1024xf32, #tpu.memory_space<vmem>>, vector<32x128xf32>,
    %57 = vector.extract_strided_slice %31 {offsets = [0, 2], sizes = [32, 1], strides = [1, 1]} : vector<32x8xi32> to vector<32x1xi32>
    %58 = vector.broadcast %57 : vector<32x1xi32> to vector<32x32xi32>
    %59 = arith.cmpi eq, %34, %58 : vector<32x32xi32>
    %60 = arith.extui %59 : vector<32x32xi1> to vector<32x32xi32>
    %61 = arith.sitofp %60 : vector<32x32xi32> to vector<32x32xf32>
    %cst_27 = arith.constant dense<0.000000e+00> : vector<32x128xf32>
    %62 = tpu.matmul %61, %27, %cst_27 {dimension_numbers = #tpu.dot_dimension_numbers<[1], [0], [0], [1], [0, 0, 1, 1], [], []>} : vector<32x32xf32>, vector<32x128xf32>, vector<32x128xf32> -> vector<32x128xf32>
    %63 = arith.mulf %27, %62 : vector<32x128xf32>
    %cst_28 = arith.constant dense<0.000000e+00> : vector<32x128xf32>
    %64 = tpu.matmul %63, %32, %cst_28 {dimension_numbers = #tpu.dot_dimension_numbers<[1], [0], [0], [1], [0, 0, 1, 1], [], []>} : vector<32x128xf32>, vector<128x128xf32>, vector<32x128xf32> -> vector<32x128xf32>
    %65 = vector.broadcast %33 : vector<1x128xf32> to vector<32x128xf32>
    %66 = arith.addf %64, %65 : vector<32x128xf32>
    %c0_29 = arith.constant 0 : index
    %c256 = arith.constant 256 : index
    %67 = vector.load %arg9[%c0_29, %c256] : memref<32x1024xf32, #tpu.memory_space<vmem>>, vector<32x128xf32>
    tpu.vector_store %arg9[%c0_29, %c256], %66 {strides = array<i32>} : memref<32x1024xf32, #tpu.memory_space<vmem>>, vector<32x128xf32>,
    %68 = vector.extract_strided_slice %31 {offsets = [0, 3], sizes = [32, 1], strides = [1, 1]} : vector<32x8xi32> to vector<32x1xi32>
    %69 = vector.broadcast %68 : vector<32x1xi32> to vector<32x32xi32>
    %70 = arith.cmpi eq, %34, %69 : vector<32x32xi32>
    %71 = arith.extui %70 : vector<32x32xi1> to vector<32x32xi32>
    %72 = arith.sitofp %71 : vector<32x32xi32> to vector<32x32xf32>
    %cst_30 = arith.constant dense<0.000000e+00> : vector<32x128xf32>
    %73 = tpu.matmul %72, %27, %cst_30 {dimension_numbers = #tpu.dot_dimension_numbers<[1], [0], [0], [1], [0, 0, 1, 1], [], []>} : vector<32x32xf32>, vector<32x128xf32>, vector<32x128xf32> -> vector<32x128xf32>
    %74 = arith.mulf %27, %73 : vector<32x128xf32>
    %cst_31 = arith.constant dense<0.000000e+00> : vector<32x128xf32>
    %75 = tpu.matmul %74, %32, %cst_31 {dimension_numbers = #tpu.dot_dimension_numbers<[1], [0], [0], [1], [0, 0, 1, 1], [], []>} : vector<32x128xf32>, vector<128x128xf32>, vector<32x128xf32> -> vector<32x128xf32>
    %76 = vector.broadcast %33 : vector<1x128xf32> to vector<32x128xf32>
    %77 = arith.addf %75, %76 : vector<32x128xf32>
    %c0_32 = arith.constant 0 : index
    %c384 = arith.constant 384 : index
    %78 = vector.load %arg9[%c0_32, %c384] : memref<32x1024xf32, #tpu.memory_space<vmem>>, vector<32x128xf32>
    tpu.vector_store %arg9[%c0_32, %c384], %77 {strides = array<i32>} : memref<32x1024xf32, #tpu.memory_space<vmem>>, vector<32x128xf32>,
    %79 = vector.extract_strided_slice %31 {offsets = [0, 4], sizes = [32, 1], strides = [1, 1]} : vector<32x8xi32> to vector<32x1xi32>
    %80 = vector.broadcast %79 : vector<32x1xi32> to vector<32x32xi32>
    %81 = arith.cmpi eq, %34, %80 : vector<32x32xi32>
    %82 = arith.extui %81 : vector<32x32xi1> to vector<32x32xi32>
    %83 = arith.sitofp %82 : vector<32x32xi32> to vector<32x32xf32>
    %cst_33 = arith.constant dense<0.000000e+00> : vector<32x128xf32>
    %84 = tpu.matmul %83, %27, %cst_33 {dimension_numbers = #tpu.dot_dimension_numbers<[1], [0], [0], [1], [0, 0, 1, 1], [], []>} : vector<32x32xf32>, vector<32x128xf32>, vector<32x128xf32> -> vector<32x128xf32>
    %85 = arith.mulf %27, %84 : vector<32x128xf32>
    %cst_34 = arith.constant dense<0.000000e+00> : vector<32x128xf32>
    %86 = tpu.matmul %85, %32, %cst_34 {dimension_numbers = #tpu.dot_dimension_numbers<[1], [0], [0], [1], [0, 0, 1, 1], [], []>} : vector<32x128xf32>, vector<128x128xf32>, vector<32x128xf32> -> vector<32x128xf32>
    %87 = vector.broadcast %33 : vector<1x128xf32> to vector<32x128xf32>
    %88 = arith.addf %86, %87 : vector<32x128xf32>
    %c0_35 = arith.constant 0 : index
    %c512 = arith.constant 512 : index
    %89 = vector.load %arg9[%c0_35, %c512] : memref<32x1024xf32, #tpu.memory_space<vmem>>, vector<32x128xf32>
    tpu.vector_store %arg9[%c0_35, %c512], %88 {strides = array<i32>} : memref<32x1024xf32, #tpu.memory_space<vmem>>, vector<32x128xf32>,
    %90 = vector.extract_strided_slice %31 {offsets = [0, 5], sizes = [32, 1], strides = [1, 1]} : vector<32x8xi32> to vector<32x1xi32>
    %91 = vector.broadcast %90 : vector<32x1xi32> to vector<32x32xi32>
    %92 = arith.cmpi eq, %34, %91 : vector<32x32xi32>
    %93 = arith.extui %92 : vector<32x32xi1> to vector<32x32xi32>
    %94 = arith.sitofp %93 : vector<32x32xi32> to vector<32x32xf32>
    %cst_36 = arith.constant dense<0.000000e+00> : vector<32x128xf32>
    %95 = tpu.matmul %94, %27, %cst_36 {dimension_numbers = #tpu.dot_dimension_numbers<[1], [0], [0], [1], [0, 0, 1, 1], [], []>} : vector<32x32xf32>, vector<32x128xf32>, vector<32x128xf32> -> vector<32x128xf32>
    %96 = arith.mulf %27, %95 : vector<32x128xf32>
    %cst_37 = arith.constant dense<0.000000e+00> : vector<32x128xf32>
    %97 = tpu.matmul %96, %32, %cst_37 {dimension_numbers = #tpu.dot_dimension_numbers<[1], [0], [0], [1], [0, 0, 1, 1], [], []>} : vector<32x128xf32>, vector<128x128xf32>, vector<32x128xf32> -> vector<32x128xf32>
    %98 = vector.broadcast %33 : vector<1x128xf32> to vector<32x128xf32>
    %99 = arith.addf %97, %98 : vector<32x128xf32>
    %c0_38 = arith.constant 0 : index
    %c640 = arith.constant 640 : index
    %100 = vector.load %arg9[%c0_38, %c640] : memref<32x1024xf32, #tpu.memory_space<vmem>>, vector<32x128xf32>
    tpu.vector_store %arg9[%c0_38, %c640], %99 {strides = array<i32>} : memref<32x1024xf32, #tpu.memory_space<vmem>>, vector<32x128xf32>,
    %101 = vector.extract_strided_slice %31 {offsets = [0, 6], sizes = [32, 1], strides = [1, 1]} : vector<32x8xi32> to vector<32x1xi32>
    %102 = vector.broadcast %101 : vector<32x1xi32> to vector<32x32xi32>
    %103 = arith.cmpi eq, %34, %102 : vector<32x32xi32>
    %104 = arith.extui %103 : vector<32x32xi1> to vector<32x32xi32>
    %105 = arith.sitofp %104 : vector<32x32xi32> to vector<32x32xf32>
    %cst_39 = arith.constant dense<0.000000e+00> : vector<32x128xf32>
    %106 = tpu.matmul %105, %27, %cst_39 {dimension_numbers = #tpu.dot_dimension_numbers<[1], [0], [0], [1], [0, 0, 1, 1], [], []>} : vector<32x32xf32>, vector<32x128xf32>, vector<32x128xf32> -> vector<32x128xf32>
    %107 = arith.mulf %27, %106 : vector<32x128xf32>
    %cst_40 = arith.constant dense<0.000000e+00> : vector<32x128xf32>
    %108 = tpu.matmul %107, %32, %cst_40 {dimension_numbers = #tpu.dot_dimension_numbers<[1], [0], [0], [1], [0, 0, 1, 1], [], []>} : vector<32x128xf32>, vector<128x128xf32>, vector<32x128xf32> -> vector<32x128xf32>
    %109 = vector.broadcast %33 : vector<1x128xf32> to vector<32x128xf32>
    %110 = arith.addf %108, %109 : vector<32x128xf32>
    %c0_41 = arith.constant 0 : index
    %c768 = arith.constant 768 : index
    %111 = vector.load %arg9[%c0_41, %c768] : memref<32x1024xf32, #tpu.memory_space<vmem>>, vector<32x128xf32>
    tpu.vector_store %arg9[%c0_41, %c768], %110 {strides = array<i32>} : memref<32x1024xf32, #tpu.memory_space<vmem>>, vector<32x128xf32>,
    %112 = vector.extract_strided_slice %31 {offsets = [0, 7], sizes = [32, 1], strides = [1, 1]} : vector<32x8xi32> to vector<32x1xi32>
    %113 = vector.broadcast %112 : vector<32x1xi32> to vector<32x32xi32>
    %114 = arith.cmpi eq, %34, %113 : vector<32x32xi32>
    %115 = arith.extui %114 : vector<32x32xi1> to vector<32x32xi32>
    %116 = arith.sitofp %115 : vector<32x32xi32> to vector<32x32xf32>
    %cst_42 = arith.constant dense<0.000000e+00> : vector<32x128xf32>
    %117 = tpu.matmul %116, %27, %cst_42 {dimension_numbers = #tpu.dot_dimension_numbers<[1], [0], [0], [1], [0, 0, 1, 1], [], []>} : vector<32x32xf32>, vector<32x128xf32>, vector<32x128xf32> -> vector<32x128xf32>
    %118 = arith.mulf %27, %117 : vector<32x128xf32>
    %cst_43 = arith.constant dense<0.000000e+00> : vector<32x128xf32>
    %119 = tpu.matmul %118, %32, %cst_43 {dimension_numbers = #tpu.dot_dimension_numbers<[1], [0], [0], [1], [0, 0, 1, 1], [], []>} : vector<32x128xf32>, vector<128x128xf32>, vector<32x128xf32> -> vector<32x128xf32>
    %120 = vector.broadcast %33 : vector<1x128xf32> to vector<32x128xf32>
    %121 = arith.addf %119, %120 : vector<32x128xf32>
    %c0_44 = arith.constant 0 : index
    %c896 = arith.constant 896 : index
    %122 = vector.load %arg9[%c0_44, %c896] : memref<32x1024xf32, #tpu.memory_space<vmem>>, vector<32x128xf32>
    tpu.vector_store %arg9[%c0_44, %c896], %121 {strides = array<i32>} : memref<32x1024xf32, #tpu.memory_space<vmem>>, vector<32x128xf32>,
    return
  }
  func.func @transform_0(%arg0: i32) -> (i32, i32) {
    %c0_i32 = arith.constant 0 : i32
    %c0_i32_0 = arith.constant 0 : i32
    return %arg0, %c0_i32 : i32, i32
  }
  func.func @transform_1(%arg0: i32) -> (i32, i32) {
    %c0_i32 = arith.constant 0 : i32
    %c0_i32_0 = arith.constant 0 : i32
    return %arg0, %c0_i32 : i32, i32
  }
  func.func @transform_2(%arg0: i32) -> (i32, i32) {
    %c0_i32 = arith.constant 0 : i32
    %c0_i32_0 = arith.constant 0 : i32
    %c0_i32_1 = arith.constant 0 : i32
    return %c0_i32, %c0_i32_0 : i32, i32
  }
  func.func @transform_3(%arg0: i32) -> (i32, i32) {
    %c0_i32 = arith.constant 0 : i32
    %c0_i32_0 = arith.constant 0 : i32
    %c0_i32_1 = arith.constant 0 : i32
    return %c0_i32, %c0_i32_0 : i32, i32
  }
  func.func @transform_4(%arg0: i32) -> (i32, i32) {
    %c0_i32 = arith.constant 0 : i32
    %c0_i32_0 = arith.constant 0 : i32
    %c0_i32_1 = arith.constant 0 : i32
    return %c0_i32, %c0_i32_0 : i32, i32
  }
  func.func @transform_5(%arg0: i32) -> (i32, i32) {
    %c0_i32 = arith.constant 0 : i32
    %c0_i32_0 = arith.constant 0 : i32
    %c0_i32_1 = arith.constant 0 : i32
    return %c0_i32, %c0_i32_0 : i32, i32
  }
  func.func @transform_6(%arg0: i32) -> (i32, i32) {
    %c0_i32 = arith.constant 0 : i32
    %c0_i32_0 = arith.constant 0 : i32
    %c0_i32_1 = arith.constant 0 : i32
    return %c0_i32, %c0_i32_0 : i32, i32
  }
  func.func @transform_7(%arg0: i32) -> (i32, i32) {
    %c0_i32 = arith.constant 0 : i32
    %c0_i32_0 = arith.constant 0 : i32
    %c0_i32_1 = arith.constant 0 : i32
    return %c0_i32, %c0_i32_0 : i32, i32
  }
  func.func @transform_8(%arg0: i32) -> (i32, i32) {
    %c0_i32 = arith.constant 0 : i32
    %c0_i32_0 = arith.constant 0 : i32
    return %arg0, %c0_i32 : i32, i32
  }
}

</mosaic_0001>

<llo_original>
// kernel: tpu_custom_call.1
$region0: #{tpu_custom_call.1}
  #allocation0 [shape = 'u32[]', space=smem, size = 0x4, offset = 0x4, fixed_abs, tag = 'smem constant byte address 0x4 - core index']
  #allocation1 [shape = 'u32[144,128]{1,0:T(1,128)}', space=vmem, size = 0x12000, scoped, tag = 'internal scratch']
  %s0 = inlined_call_operand.vmem [shape: f32[64,128], index: 0, kind: input, shape index: {}]
  %s1 = inlined_call_operand.vmem [shape: s32[64,8], index: 1, kind: input, shape index: {}]
  %s2 = inlined_call_operand.vmem [shape: f32[1,128], index: 2, kind: input, shape index: {}]
  %s3 = inlined_call_operand.vmem [shape: f32[1,128], index: 3, kind: input, shape index: {}]
  %s4 = inlined_call_operand.hbm [shape: f32[128,128], index: 4, kind: input, shape index: {}]
  %s5 = inlined_call_operand.vmem [shape: f32[1,128], index: 5, kind: input, shape index: {}]
  %s6 = inlined_call_operand.hbm [shape: f32[128,128], index: 6, kind: input, shape index: {}]
  %s7 = inlined_call_operand.vmem [shape: f32[1,128], index: 7, kind: input, shape index: {}]
  %s8 = inlined_call_operand.hbm [shape: f32[64,1024], index: 8, kind: output, shape index: {}]
  %s9 = sld [smem:[#allocation0]]
  $region73: #{tpu_custom_call.1} parent=0
    _
  %s11 = ssub.s32 1, %s9
  %s12 = scalar_select 0, %s11, %s9
  $region1: #{tpu_custom_call.1} parent=0
    #allocation2 [shape = 'u8[65536]{0}', space=vmem, size = 0x10000, scoped, tag = 'input window, operand 4, single buffered']
    #allocation3 [shape = 's32[2]{0}', space=sflag, size = 0x8, scoped, tag = 'scoped memory for tpu_custom_call.1']
    #allocation4 [shape = 's32[2]{0}', space=sflag, size = 0x8, scoped, tag = 'scoped memory for tpu_custom_call.1']
    #allocation5 [shape = 'u8[65536]{0}', space=vmem, size = 0x10000, scoped, tag = 'input window, operand 6, single buffered']
    #allocation6 [shape = 's32[1]{0}', space=sflag, size = 0x4, scoped, tag = 'scoped memory for tpu_custom_call.1']
    #allocation7 [shape = 'u8[262144]{0}', space=vmem, size = 0x40000, scoped, tag = 'output window, operand 0']
    %13 = vsyncpa [#allocation3], 0
    %14 = vsyncpa [#allocation6], 0
    %15 = vsyncpa [#allocation4], 0
    %s16 = scalar_lea.sflag [#allocation4], 1
    %17 = vsyncpa %s16, 0
    loop: start=0, step=1, limit=4
    $region2: #{tpu_custom_call.1} parent=1 // loop_pre_header
      _
    $region3: #{tpu_custom_call.1} parent=1 // loop_header
      %s19 = sphi 0, %s23
      %p20 = scmp.ge.s32.totalorder %s19, 4
      %s29 = sphi 0, %s31
      %s32 = sphi 0, %s29
      %s33 = sphi 0, %s32
      %s49 = sphi 0, %s33
      %s55 = sphi 0, %s57
      %s58 = sphi 0, %s55
      %s59 = sphi 0, %s58
      %s75 = sphi 0, %s59
      %s79 = sphi 0, %s79
      %s81 = sphi 0, %s79
      %s82 = sphi 0, %s81
      %s96 = sphi 0, %s82
      %s100 = sphi 0, %s100
      %s102 = sphi 0, %s100
      %s103 = sphi 0, %s102
      %s117 = sphi 0, %s103
      %s121 = sphi 0, %s121
      %s123 = sphi 0, %s121
      %s124 = sphi 0, %s123
      %s138 = sphi 0, %s124
      %s142 = sphi 0, %s142
      %s144 = sphi 0, %s142
      %s145 = sphi 0, %s144
      %s159 = sphi 0, %s145
      %s163 = sphi 0, %s163
      %s165 = sphi 0, %s163
      %s166 = sphi 0, %s165
      %s180 = sphi 0, %s166
      %s184 = sphi 0, %s184
      %s186 = sphi 0, %s184
      %s187 = sphi 0, %s186
      %s201 = sphi 0, %s187
      %s207 = sphi 0, %s209
      %s210 = sphi 0, %s207
      %s211 = sphi 0, %s210
      %s227 = sphi 0, %s211
    $region4: #{tpu_custom_call.1} parent=1 // loop_header_branch
      %22 = sbr.rel (%p20) target = $region8
    $region5: #{tpu_custom_call.1} parent=1 // loop_body
      %s24 = ssub.s32 %s19, 1
      %s25 = ssub.s32 %s19, 2
      %s26 = sadd.s32 %s19, 1
      %s27 = ssub.s32 %s19, %s26
      %p28 = scmp.eq.s32.totalorder %s27, 0
      %s30 = sadd.s32 %s29, 1
      %s31 = scalar_select %p28, %s29, %s30
      %p34 = pneg %p28
      %p35 = scmp.eq.s32.totalorder %s19, 1
      %p36 = por %p34, %p35
      %p37 = scmp.ne.s32.totalorder %s29, %s32
      %p38 = scmp.eq.s32.totalorder %s19, 0
      %p39 = por %p37, %p38
      %p40 = scmp.ne.s32.totalorder %s29, %s32
      %p41 = scmp.eq.s32.totalorder %s24, 1
      %p42 = por %p40, %p41
      %p43 = scmp.ne.s32.totalorder %s32, %s33
      %p44 = scmp.eq.s32.totalorder %s24, 0
      %p45 = por %p43, %p44
      %p46 = scmp.ne.s32.totalorder %s32, %s33
      %p47 = scmp.eq.s32.totalorder %s25, 1
      %p48 = por %p46, %p47
      %p50 = scmp.ne.s32.totalorder %s33, %s49
      %p51 = scmp.eq.s32.totalorder %s25, 0
      %p52 = por %p50, %p51
      %s53 = ssub.s32 %s19, %s26
      %p54 = scmp.eq.s32.totalorder %s53, 0
      %s56 = sadd.s32 %s55, 1
      %s57 = scalar_select %p54, %s55, %s56
      %p60 = pneg %p54
      %p61 = scmp.eq.s32.totalorder %s19, 1
      %p62 = por %p60, %p61
      %p63 = scmp.ne.s32.totalorder %s55, %s58
      %p64 = scmp.eq.s32.totalorder %s19, 0
      %p65 = por %p63, %p64
      %p66 = scmp.ne.s32.totalorder %s55, %s58
      %p67 = scmp.eq.s32.totalorder %s24, 1
      %p68 = por %p66, %p67
      %p69 = scmp.ne.s32.totalorder %s58, %s59
      %p70 = scmp.eq.s32.totalorder %s24, 0
      %p71 = por %p69, %p70
      %p72 = scmp.ne.s32.totalorder %s58, %s59
      %p73 = scmp.eq.s32.totalorder %s25, 1
      %p74 = por %p72, %p73
      %p76 = scmp.ne.s32.totalorder %s59, %s75
      %p77 = scmp.eq.s32.totalorder %s25, 0
      %p78 = por %p76, %p77
      %s80 = sadd.s32 %s79, 1
      %p83 = scmp.eq.s32.totalorder %s19, 1
      %p84 = scmp.ne.s32.totalorder %s79, %s81
      %p85 = scmp.eq.s32.totalorder %s19, 0
      %p86 = por %p84, %p85
      %p87 = scmp.ne.s32.totalorder %s79, %s81
      %p88 = scmp.eq.s32.totalorder %s24, 1
      %p89 = por %p87, %p88
      %p90 = scmp.ne.s32.totalorder %s81, %s82
      %p91 = scmp.eq.s32.totalorder %s24, 0
      %p92 = por %p90, %p91
      %p93 = scmp.ne.s32.totalorder %s81, %s82
      %p94 = scmp.eq.s32.totalorder %s25, 1
      %p95 = por %p93, %p94
      %p97 = scmp.ne.s32.totalorder %s82, %s96
      %p98 = scmp.eq.s32.totalorder %s25, 0
      %p99 = por %p97, %p98
      %s101 = sadd.s32 %s100, 1
      %p104 = scmp.eq.s32.totalorder %s19, 1
      %p105 = scmp.ne.s32.totalorder %s100, %s102
      %p106 = scmp.eq.s32.totalorder %s19, 0
      %p107 = por %p105, %p106
      %p108 = scmp.ne.s32.totalorder %s100, %s102
      %p109 = scmp.eq.s32.totalorder %s24, 1
      %p110 = por %p108, %p109
      %p111 = scmp.ne.s32.totalorder %s102, %s103
      %p112 = scmp.eq.s32.totalorder %s24, 0
      %p113 = por %p111, %p112
      %p114 = scmp.ne.s32.totalorder %s102, %s103
      %p115 = scmp.eq.s32.totalorder %s25, 1
      %p116 = por %p114, %p115
      %p118 = scmp.ne.s32.totalorder %s103, %s117
      %p119 = scmp.eq.s32.totalorder %s25, 0
      %p120 = por %p118, %p119
      %s122 = sadd.s32 %s121, 1
      %p125 = scmp.eq.s32.totalorder %s19, 1
      %p126 = scmp.ne.s32.totalorder %s121, %s123
      %p127 = scmp.eq.s32.totalorder %s19, 0
      %p128 = por %p126, %p127
      %p129 = scmp.ne.s32.totalorder %s121, %s123
      %p130 = scmp.eq.s32.totalorder %s24, 1
      %p131 = por %p129, %p130
      %p132 = scmp.ne.s32.totalorder %s123, %s124
      %p133 = scmp.eq.s32.totalorder %s24, 0
      %p134 = por %p132, %p133
      %p135 = scmp.ne.s32.totalorder %s123, %s124
      %p136 = scmp.eq.s32.totalorder %s25, 1
      %p137 = por %p135, %p136
      %p139 = scmp.ne.s32.totalorder %s124, %s138
      %p140 = scmp.eq.s32.totalorder %s25, 0
      %p141 = por %p139, %p140
      %s143 = sadd.s32 %s142, 1
      %p146 = scmp.eq.s32.totalorder %s19, 1
      %p147 = scmp.ne.s32.totalorder %s142, %s144
      %p148 = scmp.eq.s32.totalorder %s19, 0
      %p149 = por %p147, %p148
      %p150 = scmp.ne.s32.totalorder %s142, %s144
      %p151 = scmp.eq.s32.totalorder %s24, 1
      %p152 = por %p150, %p151
      %p153 = scmp.ne.s32.totalorder %s144, %s145
      %p154 = scmp.eq.s32.totalorder %s24, 0
      %p155 = por %p153, %p154
      %p156 = scmp.ne.s32.totalorder %s144, %s145
      %p157 = scmp.eq.s32.totalorder %s25, 1
      %p158 = por %p156, %p157
      %p160 = scmp.ne.s32.totalorder %s145, %s159
      %p161 = scmp.eq.s32.totalorder %s25, 0
      %p162 = por %p160, %p161
      %s164 = sadd.s32 %s163, 1
      %p167 = scmp.eq.s32.totalorder %s19, 1
      %p168 = scmp.ne.s32.totalorder %s163, %s165
      %p169 = scmp.eq.s32.totalorder %s19, 0
      %p170 = por %p168, %p169
      %p171 = scmp.ne.s32.totalorder %s163, %s165
      %p172 = scmp.eq.s32.totalorder %s24, 1
      %p173 = por %p171, %p172
      %p174 = scmp.ne.s32.totalorder %s165, %s166
      %p175 = scmp.eq.s32.totalorder %s24, 0
      %p176 = por %p174, %p175
      %p177 = scmp.ne.s32.totalorder %s165, %s166
      %p178 = scmp.eq.s32.totalorder %s25, 1
      %p179 = por %p177, %p178
      %p181 = scmp.ne.s32.totalorder %s166, %s180
      %p182 = scmp.eq.s32.totalorder %s25, 0
      %p183 = por %p181, %p182
      %s185 = sadd.s32 %s184, 1
      %p188 = scmp.eq.s32.totalorder %s19, 1
      %p189 = scmp.ne.s32.totalorder %s184, %s186
      %p190 = scmp.eq.s32.totalorder %s19, 0
      %p191 = por %p189, %p190
      %p192 = scmp.ne.s32.totalorder %s184, %s186
      %p193 = scmp.eq.s32.totalorder %s24, 1
      %p194 = por %p192, %p193
      %p195 = scmp.ne.s32.totalorder %s186, %s187
      %p196 = scmp.eq.s32.totalorder %s24, 0
      %p197 = por %p195, %p196
      %p198 = scmp.ne.s32.totalorder %s186, %s187
      %p199 = scmp.eq.s32.totalorder %s25, 1
      %p200 = por %p198, %p199
      %p202 = scmp.ne.s32.totalorder %s187, %s201
      %p203 = scmp.eq.s32.totalorder %s25, 0
      %p204 = por %p202, %p203
      %s205 = ssub.s32 %s19, %s26
      %p206 = scmp.eq.s32.totalorder %s205, 0
      %s208 = sadd.s32 %s207, 1
      %s209 = scalar_select %p206, %s207, %s208
      %p212 = pneg %p206
      %p213 = scmp.eq.s32.totalorder %s19, 1
      %p214 = por %p212, %p213
      %p215 = scmp.ne.s32.totalorder %s207, %s210
      %p216 = scmp.eq.s32.totalorder %s19, 0
      %p217 = por %p215, %p216
      %p218 = scmp.ne.s32.totalorder %s207, %s210
      %p219 = scmp.eq.s32.totalorder %s24, 1
      %p220 = por %p218, %p219
      %p221 = scmp.ne.s32.totalorder %s210, %s211
      %p222 = scmp.eq.s32.totalorder %s24, 0
      %p223 = por %p221, %p222
      %p224 = scmp.ne.s32.totalorder %s210, %s211
      %p225 = scmp.eq.s32.totalorder %s25, 1
      %p226 = por %p224, %p225
      %p228 = scmp.ne.s32.totalorder %s211, %s227
      %p229 = scmp.eq.s32.totalorder %s25, 0
      %p230 = por %p228, %p229
      %p231 = scmp.le.s32.totalorder 1, %s19
      %p232 = scmp.lt.s32.totalorder %s19, 3
      %p233 = pnand %p231, %p232
      %p234 = pneg %p233
      // Predicated region
      $region9: #{tpu_custom_call.1} parent=5 // pred_check
        _
      $region10: #{tpu_custom_call.1} parent=5 // pred_check_branch
        %236 = sbr.rel (%p233) target = $region12
      $region11: #{tpu_custom_call.1} parent=5 // pred_region
        %s237 = ssub.s32 %s19, 1
        // Predicated region
        $region13: #{tpu_custom_call.1} parent=11 // pred_check
          %p238 = pneg %p92
        $region14: #{tpu_custom_call.1} parent=11 // pred_check_branch
          %240 = sbr.rel (%p238) target = $region16
        $region15: #{tpu_custom_call.1} parent=11 // pred_region
          _
        $region16: #{tpu_custom_call.1} parent=11 // pred_fallthru
          _
        // Predicated region
        $region17: #{tpu_custom_call.1} parent=11 // pred_check
          %p241 = pneg %p113
        $region18: #{tpu_custom_call.1} parent=11 // pred_check_branch
          %243 = sbr.rel (%p241) target = $region20
        $region19: #{tpu_custom_call.1} parent=11 // pred_region
          _
        $region20: #{tpu_custom_call.1} parent=11 // pred_fallthru
          _
        // Predicated region
        $region21: #{tpu_custom_call.1} parent=11 // pred_check
          %p244 = pneg %p134
        $region22: #{tpu_custom_call.1} parent=11 // pred_check_branch
          %246 = sbr.rel (%p244) target = $region24
        $region23: #{tpu_custom_call.1} parent=11 // pred_region
          %s248 = ssub.s32 2048, 2048
          %249 = vsyncadd [#allocation3], %s248
          %s250 = sshll.u32 [#allocation2], 4
          %s251 = int_to_ptr.vmem [resolvable:$true] %s250
          %256 = dma.hbm_to_vmem [thread:$0]  %s4, 2048, %s251, [#allocation3], 128, 128, 8
        $region24: #{tpu_custom_call.1} parent=11 // pred_fallthru
          _
        // Predicated region
        $region25: #{tpu_custom_call.1} parent=11 // pred_check
          %p257 = pneg %p155
        $region26: #{tpu_custom_call.1} parent=11 // pred_check_branch
          %259 = sbr.rel (%p257) target = $region28
        $region27: #{tpu_custom_call.1} parent=11 // pred_region
          _
        $region28: #{tpu_custom_call.1} parent=11 // pred_fallthru
          _
        // Predicated region
        $region29: #{tpu_custom_call.1} parent=11 // pred_check
          %p260 = pneg %p176
        $region30: #{tpu_custom_call.1} parent=11 // pred_check_branch
          %262 = sbr.rel (%p260) target = $region32
        $region31: #{tpu_custom_call.1} parent=11 // pred_region
          %s264 = ssub.s32 2048, 2048
          %265 = vsyncadd [#allocation6], %s264
          %s266 = sshll.u32 [#allocation5], 4
          %s267 = int_to_ptr.vmem [resolvable:$true] %s266
          %272 = dma.hbm_to_vmem [thread:$0]  %s6, 2048, %s267, [#allocation6], 128, 128, 8
        $region32: #{tpu_custom_call.1} parent=11 // pred_fallthru
          _
        // Predicated region
        $region33: #{tpu_custom_call.1} parent=11 // pred_check
          %p273 = pneg %p197
        $region34: #{tpu_custom_call.1} parent=11 // pred_check_branch
          %275 = sbr.rel (%p273) target = $region36
        $region35: #{tpu_custom_call.1} parent=11 // pred_region
          _
        $region36: #{tpu_custom_call.1} parent=11 // pred_fallthru
          _
      $region12: #{tpu_custom_call.1} parent=5 // pred_fallthru
        _
      %p276 = scmp.lt.s32.totalorder %s19, 2
      // Predicated region
      $region37: #{tpu_custom_call.1} parent=5 // pred_check
        %p277 = pneg %p276
      $region38: #{tpu_custom_call.1} parent=5 // pred_check_branch
        %279 = sbr.rel (%p277) target = $region40
      $region39: #{tpu_custom_call.1} parent=5 // pred_region
        // Predicated region
        $region41: #{tpu_custom_call.1} parent=39 // pred_check
          %p280 = pneg %p39
        $region42: #{tpu_custom_call.1} parent=39 // pred_check_branch
          %282 = sbr.rel (%p280) target = $region44
        $region43: #{tpu_custom_call.1} parent=39 // pred_region
          %s283 = smul.u32 4, %s19
          %p284 = scmp.lt.s32.totalorder %s283, 7
          %s285 = scalar_select %p284, %s283, 7
          %s286 = smul.addr %s285, 8
          %s287 = scalar_lea.vmem %s0, %s286
          %s288 = smul.u32 4, %s19
        $region44: #{tpu_custom_call.1} parent=39 // pred_fallthru
          _
        // Predicated region
        $region45: #{tpu_custom_call.1} parent=39 // pred_check
          %p289 = pneg %p65
        $region46: #{tpu_custom_call.1} parent=39 // pred_check_branch
          %291 = sbr.rel (%p289) target = $region48
        $region47: #{tpu_custom_call.1} parent=39 // pred_region
          %s292 = smul.u32 4, %s19
          %p293 = scmp.lt.s32.totalorder %s292, 7
          %s294 = scalar_select %p293, %s292, 7
          %s295 = smul.addr %s294, 8
          %s296 = scalar_lea.vmem %s1, %s295
          %s297 = smul.u32 4, %s19
        $region48: #{tpu_custom_call.1} parent=39 // pred_fallthru
          _
      $region40: #{tpu_custom_call.1} parent=5 // pred_fallthru
        _
      %p298 = scmp.le.s32.totalorder 1, %s19
      %p299 = scmp.lt.s32.totalorder %s19, 3
      %p300 = pnand %p298, %p299
      %p301 = pneg %p300
      // Predicated region
      $region49: #{tpu_custom_call.1} parent=5 // pred_check
        _
      $region50: #{tpu_custom_call.1} parent=5 // pred_check_branch
        %303 = sbr.rel (%p300) target = $region52
      $region51: #{tpu_custom_call.1} parent=5 // pred_region
        %s304 = ssub.s32 %s19, 1
        // Predicated region
        $region53: #{tpu_custom_call.1} parent=51 // pred_check
          %p305 = pneg %p134
        $region54: #{tpu_custom_call.1} parent=51 // pred_check_branch
          %307 = sbr.rel (%p305) target = $region56
        $region55: #{tpu_custom_call.1} parent=51 // pred_region
          %308 = dma.done [#allocation3], 2048
        $region56: #{tpu_custom_call.1} parent=51 // pred_fallthru
          _
        // Predicated region
        $region57: #{tpu_custom_call.1} parent=51 // pred_check
          %p309 = pneg %p176
        $region58: #{tpu_custom_call.1} parent=51 // pred_check_branch
          %311 = sbr.rel (%p309) target = $region60
        $region59: #{tpu_custom_call.1} parent=51 // pred_region
          %312 = dma.done [#allocation6], 2048
        $region60: #{tpu_custom_call.1} parent=51 // pred_fallthru
          _
        %s313 = smul.u32 4, %s24
        %p314 = scmp.lt.s32.totalorder %s313, 7
        %s315 = scalar_select %p314, %s313, 7
        %s316 = smul.addr %s315, 8
        %s317 = scalar_lea.vmem %s0, %s316
        %p318 = pneg %p45
        %p319 = pneg %p42
        %s320 = smul.u32 4, %s24
        %p321 = scmp.lt.s32.totalorder %s320, 7
        %s322 = scalar_select %p321, %s320, 7
        %s323 = smul.addr %s322, 8
        %s324 = scalar_lea.vmem %s1, %s323
        %p325 = pneg %p71
        %p326 = pneg %p68
        %p327 = pneg %p92
        %p328 = pneg %p89
        %p329 = pneg %p113
        %p330 = pneg %p110
        %p331 = pneg %p134
        %p332 = pneg %p131
        %p333 = pneg %p155
        %p334 = pneg %p152
        %p335 = pneg %p176
        %p336 = pneg %p173
        %p337 = pneg %p197
        %p338 = pneg %p194
        %p339 = pneg %p223
        %p340 = pneg %p220
        %s341 = sand.u32 %s210, 1
        %s342 = scalar_lea.sflag [#allocation4], %s341
        %s343 = sand.u32 %s210, 1
        %s344 = smul.addr %s343, 256
        %s345 = scalar_lea.vmem [#allocation7], %s344
        %s346 = smul.u32 4, %s24
        %p347 = scmp.lt.s32.totalorder %s346, 7
        %s348 = scalar_select %p347, %s346, 7
        %s349 = smul.addr %s348, 8
        %s350 = scalar_lea.vmem %s0, %s349
        %s351 = smul.u32 4, %s24
        %s352 = smul.u32 4, %s24
        %p353 = scmp.lt.s32.totalorder %s352, 7
        %s354 = scalar_select %p353, %s352, 7
        %s355 = smul.addr %s354, 8
        %s356 = scalar_lea.vmem %s1, %s355
        %s357 = smul.u32 4, %s24
        %s358 = smul.u32 4, %s24
        %v359 = vld [vmem:[%s350] sm:$0xff]
        %v360 = vld [vmem:[%s350 + $0x8] sm:$0xff]
        %v361 = vld [vmem:[%s350 + $0x10] sm:$0xff]
        %v362 = vld [vmem:[%s350 + $0x18] sm:$0xff]
        %363 = vadd.xlane.f32.xlu0 %v359
        %v364 = vpop.xlane.xlu0 %363
        %365 = vadd.xlane.f32.xlu0 %v360
        %v366 = vpop.xlane.xlu0 %365
        %367 = vadd.xlane.f32.xlu0 %v361
        %v368 = vpop.xlane.xlu0 %367
        %369 = vadd.xlane.f32.xlu0 %v362
        %v370 = vpop.xlane.xlu0 %369
        %v371 = vrcp.pop 128.0
        %v372 = vmul.f32 %v364, %v371
        %v373 = vmul.f32 %v366, %v371
        %v374 = vmul.f32 %v368, %v371
        %v375 = vmul.f32 %v370, %v371
        %v376 = vsub.f32 %v359, %v372
        %v377 = vsub.f32 %v360, %v373
        %v378 = vsub.f32 %v361, %v374
        %v379 = vsub.f32 %v362, %v375
        %v380 = vmul.f32 %v376, %v376
        %v381 = vmul.f32 %v377, %v377
        %v382 = vmul.f32 %v378, %v378
        %v383 = vmul.f32 %v379, %v379
        %384 = vadd.xlane.f32.xlu0 %v380
        %v385 = vpop.xlane.xlu0 %384
        %386 = vadd.xlane.f32.xlu0 %v381
        %v387 = vpop.xlane.xlu0 %386
        %388 = vadd.xlane.f32.xlu0 %v382
        %v389 = vpop.xlane.xlu0 %388
        %390 = vadd.xlane.f32.xlu0 %v383
        %v391 = vpop.xlane.xlu0 %390
        %v392 = vmul.f32 %v385, %v371
        %v393 = vmul.f32 %v387, %v371
        %v394 = vmul.f32 %v389, %v371
        %v395 = vmul.f32 %v391, %v371
        %v396 = vadd.f32 %v392, 1e-05
        %v397 = vadd.f32 %v393, 1e-05
        %v398 = vadd.f32 %v394, 1e-05
        %v399 = vadd.f32 %v395, 1e-05
        %v400 = vrsqrt.pop %v396
        %v401 = vrsqrt.pop %v397
        %v402 = vrsqrt.pop %v398
        %v403 = vrsqrt.pop %v399
        %v404 = vmul.f32 %v376, %v400
        %v405 = vmul.f32 %v377, %v401
        %v406 = vmul.f32 %v378, %v402
        %v407 = vmul.f32 %v379, %v403
        %v408 = vld [vmem:[%s2] sm:$0x1]
        %v410 = vlaneseq
        %v411 = vshrl.u32 %v410, 7
        %v412 = vsub.s32 0, %v411
        %v413 = vrot.slane %v408, %v412
        %v415 = vmul.f32 %v404, %v413
        %v416 = vmul.f32 %v405, %v413
        %v417 = vmul.f32 %v406, %v413
        %v418 = vmul.f32 %v407, %v413
        %v419 = vld [vmem:[%s3] sm:$0x1]
        %v421 = vlaneseq
        %v422 = vshrl.u32 %v421, 7
        %v423 = vsub.s32 0, %v422
        %v424 = vrot.slane %v419, %v423
        %v426 = vadd.f32 %v415, %v424
        %v427 = vadd.f32 %v416, %v424
        %v428 = vadd.f32 %v417, %v424
        %v429 = vadd.f32 %v418, %v424
        %v430 = vld [vmem:[#allocation2] sm:$0xff]
        %v431 = vld [vmem:[#allocation2 + $0x8] sm:$0xff]
        %v432 = vld [vmem:[#allocation2 + $0x10] sm:$0xff]
        %v433 = vld [vmem:[#allocation2 + $0x18] sm:$0xff]
        %v434 = vld [vmem:[#allocation2 + $0x20] sm:$0xff]
        %v435 = vld [vmem:[#allocation2 + $0x28] sm:$0xff]
        %v436 = vld [vmem:[#allocation2 + $0x30] sm:$0xff]
        %v437 = vld [vmem:[#allocation2 + $0x38] sm:$0xff]
        %v438 = vld [vmem:[#allocation2 + $0x40] sm:$0xff]
        %v439 = vld [vmem:[#allocation2 + $0x48] sm:$0xff]
        %v440 = vld [vmem:[#allocation2 + $0x50] sm:$0xff]
        %v441 = vld [vmem:[#allocation2 + $0x58] sm:$0xff]
        %v442 = vld [vmem:[#allocation2 + $0x60] sm:$0xff]
        %v443 = vld [vmem:[#allocation2 + $0x68] sm:$0xff]
        %v444 = vld [vmem:[#allocation2 + $0x70] sm:$0xff]
        %v445 = vld [vmem:[#allocation2 + $0x78] sm:$0xff]
        %v446 = vld [vmem:[%s5] sm:$0x1]
        %v448 = vlaneseq
        %v449 = vshrl.u32 %v448, 7
        %v450 = vsub.s32 0, %v449
        %v451 = vrot.slane %v446, %v450
        %453 = vmatprep.subr.mxu0 0.0
        %454 = vmatpush1.msra.mxu0 %v445
        %455 = vmatprep.subr.mxu0 0.0
        %456 = vmatpush1.msra.mxu0 %v444
        %457 = vmatprep.subr.mxu0 0.0
        %458 = vmatpush1.msra.mxu0 %v443
        %459 = vmatprep.subr.mxu0 0.0
        %460 = vmatpush1.msra.mxu0 %v442
        %461 = vmatprep.subr.mxu0 0.0
        %462 = vmatpush1.msra.mxu0 %v441
        %463 = vmatprep.subr.mxu0 0.0
        %464 = vmatpush1.msra.mxu0 %v440
        %465 = vmatprep.subr.mxu0 0.0
        %466 = vmatpush1.msra.mxu0 %v439
        %467 = vmatprep.subr.mxu0 0.0
        %468 = vmatpush1.msra.mxu0 %v438
        %469 = vmatprep.subr.mxu0 0.0
        %470 = vmatpush1.msra.mxu0 %v437
        %471 = vmatprep.subr.mxu0 0.0
        %472 = vmatpush1.msra.mxu0 %v436
        %473 = vmatprep.subr.mxu0 0.0
        %474 = vmatpush1.msra.mxu0 %v435
        %475 = vmatprep.subr.mxu0 0.0
        %476 = vmatpush1.msra.mxu0 %v434
        %477 = vmatprep.subr.mxu0 0.0
        %478 = vmatpush1.msra.mxu0 %v433
        %479 = vmatprep.subr.mxu0 0.0
        %480 = vmatpush1.msra.mxu0 %v432
        %481 = vmatprep.subr.mxu0 0.0
        %482 = vmatpush1.msra.mxu0 %v431
        %483 = vmatprep.subr.mxu0 0.0
        %484 = vmatpush1.msra.mxu0 %v430
        %485 = vmatprep.subr.mxu0 0.0
        %486 = vmatpush2.msra.mxu0 0.0
        %487 = vmatprep.subr.mxu0 0.0
        %488 = vmatpush2.msra.mxu0 0.0
        %489 = vmatprep.subr.mxu0 0.0
        %490 = vmatpush2.msra.mxu0 0.0
        %491 = vmatprep.subr.mxu0 0.0
        %492 = vmatpush2.msra.mxu0 0.0
        %493 = vmatprep.subr.mxu0 0.0
        %494 = vmatpush2.msra.mxu0 0.0
        %495 = vmatprep.subr.mxu0 0.0
        %496 = vmatpush2.msra.mxu0 0.0
        %497 = vmatprep.subr.mxu0 0.0
        %498 = vmatpush2.msra.mxu0 0.0
        %499 = vmatprep.subr.mxu0 0.0
        %500 = vmatpush2.msra.mxu0 0.0
        %501 = vmatprep.subr.mxu0 0.0
        %502 = vmatpush2.msra.mxu0 0.0
        %503 = vmatprep.subr.mxu0 0.0
        %504 = vmatpush2.msra.mxu0 0.0
        %505 = vmatprep.subr.mxu0 0.0
        %506 = vmatpush2.msra.mxu0 0.0
        %507 = vmatprep.subr.mxu0 0.0
        %508 = vmatpush2.msra.mxu0 0.0
        %509 = vmatprep.subr.mxu0 0.0
        %510 = vmatpush2.msra.mxu0 0.0
        %511 = vmatprep.subr.mxu0 0.0
        %512 = vmatpush2.msra.mxu0 0.0
        %513 = vmatprep.subr.mxu0 0.0
        %514 = vmatpush2.msra.mxu0 0.0
        %515 = vmatprep.subr.mxu0 0.0
        %516 = vmatpush2.msra.mxu0 0.0
        %517 = vmatprep.mubr.f32.mxu0 0.0
        %518 = vmatmul.mubr.f32.gmra.mxu0 %v426
        %v519 = vpop.f32.mrf.mxu0
        %v520 = vadd.f32 %v451, %v519
        %v521 = vpop.f32.mrf.mxu0
        %522 = vmatprep.mubr.f32.mxu0 0.0
        %523 = vmatmul.mubr.f32.gmra.mxu0 %v427
        %v524 = vpop.f32.mrf.mxu0
        %v525 = vadd.f32 %v451, %v524
        %v526 = vpop.f32.mrf.mxu0
        %527 = vmatprep.mubr.f32.mxu0 0.0
        %528 = vmatmul.mubr.f32.gmra.mxu0 %v428
        %v529 = vpop.f32.mrf.mxu0
        %v530 = vadd.f32 %v451, %v529
        %v531 = vpop.f32.mrf.mxu0
        %532 = vmatprep.mubr.f32.mxu0 0.0
        %533 = vmatmul.mubr.f32.gmra.mxu0 %v429
        %v534 = vpop.f32.mrf.mxu0
        %v535 = vadd.f32 %v451, %v534
        %v536 = vpop.f32.mrf.mxu0
        %537 = vdwg.mxu0
        %s538 = smul.u32 %s24, 32
        %v539 = vld [vmem:[%s356] sm:$0xff]
        %v540 = vld [vmem:[%s356 + $0x8] sm:$0xff]
        %v541 = vld [vmem:[%s356 + $0x10] sm:$0xff]
        %v542 = vld [vmem:[%s356 + $0x18] sm:$0xff]
        %v543 = vstv %s538
        %v544 = vsub.s32 %v539, %v543
        %v545 = vsub.s32 %v540, %v543
        %v546 = vsub.s32 %v541, %v543
        %v547 = vsub.s32 %v542, %v543
        %v548 = vld [vmem:[#allocation5] sm:$0xff]
        %v549 = vld [vmem:[#allocation5 + $0x8] sm:$0xff]
        %v550 = vld [vmem:[#allocation5 + $0x10] sm:$0xff]
        %v551 = vld [vmem:[#allocation5 + $0x18] sm:$0xff]
        %v552 = vld [vmem:[#allocation5 + $0x20] sm:$0xff]
        %v553 = vld [vmem:[#allocation5 + $0x28] sm:$0xff]
        %v554 = vld [vmem:[#allocation5 + $0x30] sm:$0xff]
        %v555 = vld [vmem:[#allocation5 + $0x38] sm:$0xff]
        %v556 = vld [vmem:[#allocation5 + $0x40] sm:$0xff]
        %v557 = vld [vmem:[#allocation5 + $0x48] sm:$0xff]
        %v558 = vld [vmem:[#allocation5 + $0x50] sm:$0xff]
        %v559 = vld [vmem:[#allocation5 + $0x58] sm:$0xff]
        %v560 = vld [vmem:[#allocation5 + $0x60] sm:$0xff]
        %v561 = vld [vmem:[#allocation5 + $0x68] sm:$0xff]
        %v562 = vld [vmem:[#allocation5 + $0x70] sm:$0xff]
        %v563 = vld [vmem:[#allocation5 + $0x78] sm:$0xff]
        %v564 = vld [vmem:[%s7] sm:$0x1]
        %v565 = vlaneseq
        %v566 = vand.u32 %v565, 127
        %567 = vset.pattern.permute.xlu0 0
        %568 = vperm.xlu0 %567, %v544
        %v569 = vpop.permute.xlu0 %568
        %570 = vset.pattern.permute.xlu0 0
        %571 = vperm.xlu0 %570, %v545
        %v572 = vpop.permute.xlu0 %571
        %573 = vset.pattern.permute.xlu0 0
        %574 = vperm.xlu0 %573, %v546
        %v575 = vpop.permute.xlu0 %574
        %576 = vset.pattern.permute.xlu0 0
        %577 = vperm.xlu0 %576, %v547
        %v578 = vpop.permute.xlu0 %577
        %vm579 = vcmp.eq.s32.totalorder %v566, %v569
        %vm580 = vcmp.eq.s32.totalorder %v566, %v572
        %vm581 = vcmp.eq.s32.totalorder %v566, %v575
        %vm582 = vcmp.eq.s32.totalorder %v566, %v578
        %v583 = vsel %vm579, 1, 0
        %v584 = vsel %vm580, 1, 0
        %v585 = vsel %vm581, 1, 0
        %v586 = vsel %vm582, 1, 0
        %v587 = vcvt.s32.f32 %v583
        %v588 = vcvt.s32.f32 %v584
        %v589 = vcvt.s32.f32 %v585
        %v590 = vcvt.s32.f32 %v586
        %vm591 = vcmask 261120
        %v593 = vsel %vm591, %v587, 0
        %v596 = vsel %vm591, %v588, 0
        %v599 = vsel %vm591, %v589, 0
        %v602 = vsel %vm591, %v590, 0
        %604 = vmatprep.subr.mxu0 0.0
        %605 = vmatpush1.msra.mxu0 0.0
        %606 = vmatprep.subr.mxu0 0.0
        %607 = vmatpush1.msra.mxu0 0.0
        %608 = vmatprep.subr.mxu0 0.0
        %609 = vmatpush1.msra.mxu0 0.0
        %610 = vmatprep.subr.mxu0 0.0
        %611 = vmatpush1.msra.mxu0 0.0
        %612 = vmatprep.subr.mxu0 0.0
        %613 = vmatpush1.msra.mxu0 0.0
        %614 = vmatprep.subr.mxu0 0.0
        %615 = vmatpush1.msra.mxu0 0.0
        %616 = vmatprep.subr.mxu0 0.0
        %617 = vmatpush1.msra.mxu0 0.0
        %618 = vmatprep.subr.mxu0 0.0
        %619 = vmatpush1.msra.mxu0 0.0
        %620 = vmatprep.subr.mxu0 0.0
        %621 = vmatpush1.msra.mxu0 0.0
        %622 = vmatprep.subr.mxu0 0.0
        %623 = vmatpush1.msra.mxu0 0.0
        %624 = vmatprep.subr.mxu0 0.0
        %625 = vmatpush1.msra.mxu0 0.0
        %626 = vmatprep.subr.mxu0 0.0
        %627 = vmatpush1.msra.mxu0 0.0
        %628 = vmatprep.subr.mxu0 0.0
        %629 = vmatpush1.msra.mxu0 %v535
        %630 = vmatprep.subr.mxu0 0.0
        %631 = vmatpush1.msra.mxu0 %v530
        %632 = vmatprep.subr.mxu0 0.0
        %633 = vmatpush1.msra.mxu0 %v525
        %634 = vmatprep.subr.mxu0 0.0
        %635 = vmatpush1.msra.mxu0 %v520
        %636 = vmatprep.subr.mxu0 0.0
        %637 = vmatpush2.msra.mxu0 0.0
        %638 = vmatprep.subr.mxu0 0.0
        %639 = vmatpush2.msra.mxu0 0.0
        %640 = vmatprep.subr.mxu0 0.0
        %641 = vmatpush2.msra.mxu0 0.0
        %642 = vmatprep.subr.mxu0 0.0
        %643 = vmatpush2.msra.mxu0 0.0
        %644 = vmatprep.subr.mxu0 0.0
        %645 = vmatpush2.msra.mxu0 0.0
        %646 = vmatprep.subr.mxu0 0.0
        %647 = vmatpush2.msra.mxu0 0.0
        %648 = vmatprep.subr.mxu0 0.0
        %649 = vmatpush2.msra.mxu0 0.0
        %650 = vmatprep.subr.mxu0 0.0
        %651 = vmatpush2.msra.mxu0 0.0
        %652 = vmatprep.subr.mxu0 0.0
        %653 = vmatpush2.msra.mxu0 0.0
        %654 = vmatprep.subr.mxu0 0.0
        %655 = vmatpush2.msra.mxu0 0.0
        %656 = vmatprep.subr.mxu0 0.0
        %657 = vmatpush2.msra.mxu0 0.0
        %658 = vmatprep.subr.mxu0 0.0
        %659 = vmatpush2.msra.mxu0 0.0
        %660 = vmatprep.subr.mxu0 0.0
        %661 = vmatpush2.msra.mxu0 0.0
        %662 = vmatprep.subr.mxu0 0.0
        %663 = vmatpush2.msra.mxu0 0.0
        %664 = vmatprep.subr.mxu0 0.0
        %665 = vmatpush2.msra.mxu0 0.0
        %666 = vmatprep.subr.mxu0 0.0
        %667 = vmatpush2.msra.mxu0 0.0
        %668 = vmatprep.mubr.f32.mxu0 0.0
        %669 = vmatmul.mubr.f32.gmra.mxu0 %v593
        %v670 = vpop.f32.mrf.mxu0
        %v671 = vadd.f32 0.0, %v670
        %v672 = vpop.f32.mrf.mxu0
        %673 = vmatprep.mubr.f32.mxu0 0.0
        %674 = vmatmul.mubr.f32.gmra.mxu0 %v596
        %v675 = vpop.f32.mrf.mxu0
        %v676 = vadd.f32 0.0, %v675
        %v677 = vpop.f32.mrf.mxu0
        %678 = vmatprep.mubr.f32.mxu0 0.0
        %679 = vmatmul.mubr.f32.gmra.mxu0 %v599
        %v680 = vpop.f32.mrf.mxu0
        %v681 = vadd.f32 0.0, %v680
        %v682 = vpop.f32.mrf.mxu0
        %683 = vmatprep.mubr.f32.mxu0 0.0
        %684 = vmatmul.mubr.f32.gmra.mxu0 %v602
        %v685 = vpop.f32.mrf.mxu0
        %v686 = vadd.f32 0.0, %v685
        %v687 = vpop.f32.mrf.mxu0
        %688 = vdwg.mxu0
        %v689 = vmul.f32 %v520, %v671
        %v690 = vmul.f32 %v525, %v676
        %v691 = vmul.f32 %v530, %v681
        %v692 = vmul.f32 %v535, %v686
        %v694 = vlaneseq
        %v695 = vshrl.u32 %v694, 7
        %v696 = vsub.s32 0, %v695
        %v697 = vrot.slane %v564, %v696
        %699 = vmatprep.subr.mxu0 0.0
        %700 = vmatpush1.msra.mxu0 %v563
        %701 = vmatprep.subr.mxu0 0.0
        %702 = vmatpush1.msra.mxu0 %v562
        %703 = vmatprep.subr.mxu0 0.0
        %704 = vmatpush1.msra.mxu0 %v561
        %705 = vmatprep.subr.mxu0 0.0
        %706 = vmatpush1.msra.mxu0 %v560
        %707 = vmatprep.subr.mxu0 0.0
        %708 = vmatpush1.msra.mxu0 %v559
        %709 = vmatprep.subr.mxu0 0.0
        %710 = vmatpush1.msra.mxu0 %v558
        %711 = vmatprep.subr.mxu0 0.0
        %712 = vmatpush1.msra.mxu0 %v557
        %713 = vmatprep.subr.mxu0 0.0
        %714 = vmatpush1.msra.mxu0 %v556
        %715 = vmatprep.subr.mxu0 0.0
        %716 = vmatpush1.msra.mxu0 %v555
        %717 = vmatprep.subr.mxu0 0.0
        %718 = vmatpush1.msra.mxu0 %v554
        %719 = vmatprep.subr.mxu0 0.0
        %720 = vmatpush1.msra.mxu0 %v553
        %721 = vmatprep.subr.mxu0 0.0
        %722 = vmatpush1.msra.mxu0 %v552
        %723 = vmatprep.subr.mxu0 0.0
        %724 = vmatpush1.msra.mxu0 %v551
        %725 = vmatprep.subr.mxu0 0.0
        %726 = vmatpush1.msra.mxu0 %v550
        %727 = vmatprep.subr.mxu0 0.0
        %728 = vmatpush1.msra.mxu0 %v549
        %729 = vmatprep.subr.mxu0 0.0
        %730 = vmatpush1.msra.mxu0 %v548
        %731 = vmatprep.subr.mxu0 0.0
        %732 = vmatpush2.msra.mxu0 0.0
        %733 = vmatprep.subr.mxu0 0.0
        %734 = vmatpush2.msra.mxu0 0.0
        %735 = vmatprep.subr.mxu0 0.0
        %736 = vmatpush2.msra.mxu0 0.0
        %737 = vmatprep.subr.mxu0 0.0
        %738 = vmatpush2.msra.mxu0 0.0
        %739 = vmatprep.subr.mxu0 0.0
        %740 = vmatpush2.msra.mxu0 0.0
        %741 = vmatprep.subr.mxu0 0.0
        %742 = vmatpush2.msra.mxu0 0.0
        %743 = vmatprep.subr.mxu0 0.0
        %744 = vmatpush2.msra.mxu0 0.0
        %745 = vmatprep.subr.mxu0 0.0
        %746 = vmatpush2.msra.mxu0 0.0
        %747 = vmatprep.subr.mxu0 0.0
        %748 = vmatpush2.msra.mxu0 0.0
        %749 = vmatprep.subr.mxu0 0.0
        %750 = vmatpush2.msra.mxu0 0.0
        %751 = vmatprep.subr.mxu0 0.0
        %752 = vmatpush2.msra.mxu0 0.0
        %753 = vmatprep.subr.mxu0 0.0
        %754 = vmatpush2.msra.mxu0 0.0
        %755 = vmatprep.subr.mxu0 0.0
        %756 = vmatpush2.msra.mxu0 0.0
        %757 = vmatprep.subr.mxu0 0.0
        %758 = vmatpush2.msra.mxu0 0.0
        %759 = vmatprep.subr.mxu0 0.0
        %760 = vmatpush2.msra.mxu0 0.0
        %761 = vmatprep.subr.mxu0 0.0
        %762 = vmatpush2.msra.mxu0 0.0
        %763 = vmatprep.mubr.f32.mxu0 0.0
        %764 = vmatmul.mubr.f32.gmra.mxu0 %v689
        %v765 = vpop.f32.mrf.mxu0
        %v766 = vadd.f32 %v697, %v765
        %v767 = vpop.f32.mrf.mxu0
        %768 = vmatprep.mubr.f32.mxu0 0.0
        %769 = vmatmul.mubr.f32.gmra.mxu0 %v690
        %v770 = vpop.f32.mrf.mxu0
        %v771 = vadd.f32 %v697, %v770
        %v772 = vpop.f32.mrf.mxu0
        %773 = vmatprep.mubr.f32.mxu0 0.0
        %774 = vmatmul.mubr.f32.gmra.mxu0 %v691
        %v775 = vpop.f32.mrf.mxu0
        %v776 = vadd.f32 %v697, %v775
        %v777 = vpop.f32.mrf.mxu0
        %778 = vmatprep.mubr.f32.mxu0 0.0
        %779 = vmatmul.mubr.f32.gmra.mxu0 %v692
        %v780 = vpop.f32.mrf.mxu0
        %v781 = vadd.f32 %v697, %v780
        %v782 = vpop.f32.mrf.mxu0
        %783 = vdwg.mxu0
        %784 = vst [vmem:[%s345] sm:$0xff] %v766
        %785 = vst [vmem:[%s345 + $0x40] sm:$0xff] %v771
        %786 = vst [vmem:[%s345 + $0x80] sm:$0xff] %v776
        %787 = vst [vmem:[%s345 + $0xc0] sm:$0xff] %v781
        %788 = vset.pattern.permute.xlu0 1
        %789 = vperm.xlu0 %788, %v544
        %v790 = vpop.permute.xlu0 %789
        %791 = vset.pattern.permute.xlu0 1
        %792 = vperm.xlu0 %791, %v545
        %v793 = vpop.permute.xlu0 %792
        %794 = vset.pattern.permute.xlu0 1
        %795 = vperm.xlu0 %794, %v546
        %v796 = vpop.permute.xlu0 %795
        %797 = vset.pattern.permute.xlu0 1
        %798 = vperm.xlu0 %797, %v547
        %v799 = vpop.permute.xlu0 %798
        %vm800 = vcmp.eq.s32.totalorder %v566, %v790
        %vm801 = vcmp.eq.s32.totalorder %v566, %v793
        %vm802 = vcmp.eq.s32.totalorder %v566, %v796
        %vm803 = vcmp.eq.s32.totalorder %v566, %v799
        %v804 = vsel %vm800, 1, 0
        %v805 = vsel %vm801, 1, 0
        %v806 = vsel %vm802, 1, 0
        %v807 = vsel %vm803, 1, 0
        %v808 = vcvt.s32.f32 %v804
        %v809 = vcvt.s32.f32 %v805
        %v810 = vcvt.s32.f32 %v806
        %v811 = vcvt.s32.f32 %v807
        %v813 = vsel %vm591, %v808, 0
        %v816 = vsel %vm591, %v809, 0
        %v819 = vsel %vm591, %v810, 0
        %v822 = vsel %vm591, %v811, 0
        %824 = vmatprep.subr.mxu0 0.0
        %825 = vmatpush1.msra.mxu0 0.0
        %826 = vmatprep.subr.mxu0 0.0
        %827 = vmatpush1.msra.mxu0 0.0
        %828 = vmatprep.subr.mxu0 0.0
        %829 = vmatpush1.msra.mxu0 0.0
        %830 = vmatprep.subr.mxu0 0.0
        %831 = vmatpush1.msra.mxu0 0.0
        %832 = vmatprep.subr.mxu0 0.0
        %833 = vmatpush1.msra.mxu0 0.0
        %834 = vmatprep.subr.mxu0 0.0
        %835 = vmatpush1.msra.mxu0 0.0
        %836 = vmatprep.subr.mxu0 0.0
        %837 = vmatpush1.msra.mxu0 0.0
        %838 = vmatprep.subr.mxu0 0.0
        %839 = vmatpush1.msra.mxu0 0.0
        %840 = vmatprep.subr.mxu0 0.0
        %841 = vmatpush1.msra.mxu0 0.0
        %842 = vmatprep.subr.mxu0 0.0
        %843 = vmatpush1.msra.mxu0 0.0
        %844 = vmatprep.subr.mxu0 0.0
        %845 = vmatpush1.msra.mxu0 0.0
        %846 = vmatprep.subr.mxu0 0.0
        %847 = vmatpush1.msra.mxu0 0.0
        %848 = vmatprep.subr.mxu0 0.0
        %849 = vmatpush1.msra.mxu0 %v535
        %850 = vmatprep.subr.mxu0 0.0
        %851 = vmatpush1.msra.mxu0 %v530
        %852 = vmatprep.subr.mxu0 0.0
        %853 = vmatpush1.msra.mxu0 %v525
        %854 = vmatprep.subr.mxu0 0.0
        %855 = vmatpush1.msra.mxu0 %v520
        %856 = vmatprep.subr.mxu0 0.0
        %857 = vmatpush2.msra.mxu0 0.0
        %858 = vmatprep.subr.mxu0 0.0
        %859 = vmatpush2.msra.mxu0 0.0
        %860 = vmatprep.subr.mxu0 0.0
        %861 = vmatpush2.msra.mxu0 0.0
        %862 = vmatprep.subr.mxu0 0.0
        %863 = vmatpush2.msra.mxu0 0.0
        %864 = vmatprep.subr.mxu0 0.0
        %865 = vmatpush2.msra.mxu0 0.0
        %866 = vmatprep.subr.mxu0 0.0
        %867 = vmatpush2.msra.mxu0 0.0
        %868 = vmatprep.subr.mxu0 0.0
        %869 = vmatpush2.msra.mxu0 0.0
        %870 = vmatprep.subr.mxu0 0.0
        %871 = vmatpush2.msra.mxu0 0.0
        %872 = vmatprep.subr.mxu0 0.0
        %873 = vmatpush2.msra.mxu0 0.0
        %874 = vmatprep.subr.mxu0 0.0
        %875 = vmatpush2.msra.mxu0 0.0
        %876 = vmatprep.subr.mxu0 0.0
        %877 = vmatpush2.msra.mxu0 0.0
        %878 = vmatprep.subr.mxu0 0.0
        %879 = vmatpush2.msra.mxu0 0.0
        %880 = vmatprep.subr.mxu0 0.0
        %881 = vmatpush2.msra.mxu0 0.0
        %882 = vmatprep.subr.mxu0 0.0
        %883 = vmatpush2.msra.mxu0 0.0
        %884 = vmatprep.subr.mxu0 0.0
        %885 = vmatpush2.msra.mxu0 0.0
        %886 = vmatprep.subr.mxu0 0.0
        %887 = vmatpush2.msra.mxu0 0.0
        %888 = vmatprep.mubr.f32.mxu0 0.0
        %889 = vmatmul.mubr.f32.gmra.mxu0 %v813
        %v890 = vpop.f32.mrf.mxu0
        %v891 = vadd.f32 0.0, %v890
        %v892 = vpop.f32.mrf.mxu0
        %893 = vmatprep.mubr.f32.mxu0 0.0
        %894 = vmatmul.mubr.f32.gmra.mxu0 %v816
        %v895 = vpop.f32.mrf.mxu0
        %v896 = vadd.f32 0.0, %v895
        %v897 = vpop.f32.mrf.mxu0
        %898 = vmatprep.mubr.f32.mxu0 0.0
        %899 = vmatmul.mubr.f32.gmra.mxu0 %v819
        %v900 = vpop.f32.mrf.mxu0
        %v901 = vadd.f32 0.0, %v900
        %v902 = vpop.f32.mrf.mxu0
        %903 = vmatprep.mubr.f32.mxu0 0.0
        %904 = vmatmul.mubr.f32.gmra.mxu0 %v822
        %v905 = vpop.f32.mrf.mxu0
        %v906 = vadd.f32 0.0, %v905
        %v907 = vpop.f32.mrf.mxu0
        %908 = vdwg.mxu0
        %v909 = vmul.f32 %v520, %v891
        %v910 = vmul.f32 %v525, %v896
        %v911 = vmul.f32 %v530, %v901
        %v912 = vmul.f32 %v535, %v906
        %913 = vmatprep.subr.mxu0 0.0
        %914 = vmatpush1.msra.mxu0 %v563
        %915 = vmatprep.subr.mxu0 0.0
        %916 = vmatpush1.msra.mxu0 %v562
        %917 = vmatprep.subr.mxu0 0.0
        %918 = vmatpush1.msra.mxu0 %v561
        %919 = vmatprep.subr.mxu0 0.0
        %920 = vmatpush1.msra.mxu0 %v560
        %921 = vmatprep.subr.mxu0 0.0
        %922 = vmatpush1.msra.mxu0 %v559
        %923 = vmatprep.subr.mxu0 0.0
        %924 = vmatpush1.msra.mxu0 %v558
        %925 = vmatprep.subr.mxu0 0.0
        %926 = vmatpush1.msra.mxu0 %v557
        %927 = vmatprep.subr.mxu0 0.0
        %928 = vmatpush1.msra.mxu0 %v556
        %929 = vmatprep.subr.mxu0 0.0
        %930 = vmatpush1.msra.mxu0 %v555
        %931 = vmatprep.subr.mxu0 0.0
        %932 = vmatpush1.msra.mxu0 %v554
        %933 = vmatprep.subr.mxu0 0.0
        %934 = vmatpush1.msra.mxu0 %v553
        %935 = vmatprep.subr.mxu0 0.0
        %936 = vmatpush1.msra.mxu0 %v552
        %937 = vmatprep.subr.mxu0 0.0
        %938 = vmatpush1.msra.mxu0 %v551
        %939 = vmatprep.subr.mxu0 0.0
        %940 = vmatpush1.msra.mxu0 %v550
        %941 = vmatprep.subr.mxu0 0.0
        %942 = vmatpush1.msra.mxu0 %v549
        %943 = vmatprep.subr.mxu0 0.0
        %944 = vmatpush1.msra.mxu0 %v548
        %945 = vmatprep.subr.mxu0 0.0
        %946 = vmatpush2.msra.mxu0 0.0
        %947 = vmatprep.subr.mxu0 0.0
        %948 = vmatpush2.msra.mxu0 0.0
        %949 = vmatprep.subr.mxu0 0.0
        %950 = vmatpush2.msra.mxu0 0.0
        %951 = vmatprep.subr.mxu0 0.0
        %952 = vmatpush2.msra.mxu0 0.0
        %953 = vmatprep.subr.mxu0 0.0
        %954 = vmatpush2.msra.mxu0 0.0
        %955 = vmatprep.subr.mxu0 0.0
        %956 = vmatpush2.msra.mxu0 0.0
        %957 = vmatprep.subr.mxu0 0.0
        %958 = vmatpush2.msra.mxu0 0.0
        %959 = vmatprep.subr.mxu0 0.0
        %960 = vmatpush2.msra.mxu0 0.0
        %961 = vmatprep.subr.mxu0 0.0
        %962 = vmatpush2.msra.mxu0 0.0
        %963 = vmatprep.subr.mxu0 0.0
        %964 = vmatpush2.msra.mxu0 0.0
        %965 = vmatprep.subr.mxu0 0.0
        %966 = vmatpush2.msra.mxu0 0.0
        %967 = vmatprep.subr.mxu0 0.0
        %968 = vmatpush2.msra.mxu0 0.0
        %969 = vmatprep.subr.mxu0 0.0
        %970 = vmatpush2.msra.mxu0 0.0
        %971 = vmatprep.subr.mxu0 0.0
        %972 = vmatpush2.msra.mxu0 0.0
        %973 = vmatprep.subr.mxu0 0.0
        %974 = vmatpush2.msra.mxu0 0.0
        %975 = vmatprep.subr.mxu0 0.0
        %976 = vmatpush2.msra.mxu0 0.0
        %977 = vmatprep.mubr.f32.mxu0 0.0
        %978 = vmatmul.mubr.f32.gmra.mxu0 %v909
        %v979 = vpop.f32.mrf.mxu0
        %v980 = vadd.f32 %v697, %v979
        %v981 = vpop.f32.mrf.mxu0
        %982 = vmatprep.mubr.f32.mxu0 0.0
        %983 = vmatmul.mubr.f32.gmra.mxu0 %v910
        %v984 = vpop.f32.mrf.mxu0
        %v985 = vadd.f32 %v697, %v984
        %v986 = vpop.f32.mrf.mxu0
        %987 = vmatprep.mubr.f32.mxu0 0.0
        %988 = vmatmul.mubr.f32.gmra.mxu0 %v911
        %v989 = vpop.f32.mrf.mxu0
        %v990 = vadd.f32 %v697, %v989
        %v991 = vpop.f32.mrf.mxu0
        %992 = vmatprep.mubr.f32.mxu0 0.0
        %993 = vmatmul.mubr.f32.gmra.mxu0 %v912
        %v994 = vpop.f32.mrf.mxu0
        %v995 = vadd.f32 %v697, %v994
        %v996 = vpop.f32.mrf.mxu0
        %997 = vdwg.mxu0
        %998 = vst [vmem:[%s345 + $0x8] sm:$0xff] %v980
        %999 = vst [vmem:[%s345 + $0x48] sm:$0xff] %v985
        %1000 = vst [vmem:[%s345 + $0x88] sm:$0xff] %v990
        %1001 = vst [vmem:[%s345 + $0xc8] sm:$0xff] %v995
        %1002 = vset.pattern.permute.xlu0 2
        %1003 = vperm.xlu0 %1002, %v544
        %v1004 = vpop.permute.xlu0 %1003
        %1005 = vset.pattern.permute.xlu0 2
        %1006 = vperm.xlu0 %1005, %v545
        %v1007 = vpop.permute.xlu0 %1006
        %1008 = vset.pattern.permute.xlu0 2
        %1009 = vperm.xlu0 %1008, %v546
        %v1010 = vpop.permute.xlu0 %1009
        %1011 = vset.pattern.permute.xlu0 2
        %1012 = vperm.xlu0 %1011, %v547
        %v1013 = vpop.permute.xlu0 %1012
        %vm1014 = vcmp.eq.s32.totalorder %v566, %v1004
        %vm1015 = vcmp.eq.s32.totalorder %v566, %v1007
        %vm1016 = vcmp.eq.s32.totalorder %v566, %v1010
        %vm1017 = vcmp.eq.s32.totalorder %v566, %v1013
        %v1018 = vsel %vm1014, 1, 0
        %v1019 = vsel %vm1015, 1, 0
        %v1020 = vsel %vm1016, 1, 0
        %v1021 = vsel %vm1017, 1, 0
        %v1022 = vcvt.s32.f32 %v1018
        %v1023 = vcvt.s32.f32 %v1019
        %v1024 = vcvt.s32.f32 %v1020
        %v1025 = vcvt.s32.f32 %v1021
        %v1027 = vsel %vm591, %v1022, 0
        %v1030 = vsel %vm591, %v1023, 0
        %v1033 = vsel %vm591, %v1024, 0
        %v1036 = vsel %vm591, %v1025, 0
        %1038 = vmatprep.subr.mxu0 0.0
        %1039 = vmatpush1.msra.mxu0 0.0
        %1040 = vmatprep.subr.mxu0 0.0
        %1041 = vmatpush1.msra.mxu0 0.0
        %1042 = vmatprep.subr.mxu0 0.0
        %1043 = vmatpush1.msra.mxu0 0.0
        %1044 = vmatprep.subr.mxu0 0.0
        %1045 = vmatpush1.msra.mxu0 0.0
        %1046 = vmatprep.subr.mxu0 0.0
        %1047 = vmatpush1.msra.mxu0 0.0
        %1048 = vmatprep.subr.mxu0 0.0
        %1049 = vmatpush1.msra.mxu0 0.0
        %1050 = vmatprep.subr.mxu0 0.0
        %1051 = vmatpush1.msra.mxu0 0.0
        %1052 = vmatprep.subr.mxu0 0.0
        %1053 = vmatpush1.msra.mxu0 0.0
        %1054 = vmatprep.subr.mxu0 0.0
        %1055 = vmatpush1.msra.mxu0 0.0
        %1056 = vmatprep.subr.mxu0 0.0
        %1057 = vmatpush1.msra.mxu0 0.0
        %1058 = vmatprep.subr.mxu0 0.0
        %1059 = vmatpush1.msra.mxu0 0.0
        %1060 = vmatprep.subr.mxu0 0.0
        %1061 = vmatpush1.msra.mxu0 0.0
        %1062 = vmatprep.subr.mxu0 0.0
        %1063 = vmatpush1.msra.mxu0 %v535
        %1064 = vmatprep.subr.mxu0 0.0
        %1065 = vmatpush1.msra.mxu0 %v530
        %1066 = vmatprep.subr.mxu0 0.0
        %1067 = vmatpush1.msra.mxu0 %v525
        %1068 = vmatprep.subr.mxu0 0.0
        %1069 = vmatpush1.msra.mxu0 %v520
        %1070 = vmatprep.subr.mxu0 0.0
        %1071 = vmatpush2.msra.mxu0 0.0
        %1072 = vmatprep.subr.mxu0 0.0
        %1073 = vmatpush2.msra.mxu0 0.0
        %1074 = vmatprep.subr.mxu0 0.0
        %1075 = vmatpush2.msra.mxu0 0.0
        %1076 = vmatprep.subr.mxu0 0.0
        %1077 = vmatpush2.msra.mxu0 0.0
        %1078 = vmatprep.subr.mxu0 0.0
        %1079 = vmatpush2.msra.mxu0 0.0
        %1080 = vmatprep.subr.mxu0 0.0
        %1081 = vmatpush2.msra.mxu0 0.0
        %1082 = vmatprep.subr.mxu0 0.0
        %1083 = vmatpush2.msra.mxu0 0.0
        %1084 = vmatprep.subr.mxu0 0.0
        %1085 = vmatpush2.msra.mxu0 0.0
        %1086 = vmatprep.subr.mxu0 0.0
        %1087 = vmatpush2.msra.mxu0 0.0
        %1088 = vmatprep.subr.mxu0 0.0
        %1089 = vmatpush2.msra.mxu0 0.0
        %1090 = vmatprep.subr.mxu0 0.0
        %1091 = vmatpush2.msra.mxu0 0.0
        %1092 = vmatprep.subr.mxu0 0.0
        %1093 = vmatpush2.msra.mxu0 0.0
        %1094 = vmatprep.subr.mxu0 0.0
        %1095 = vmatpush2.msra.mxu0 0.0
        %1096 = vmatprep.subr.mxu0 0.0
        %1097 = vmatpush2.msra.mxu0 0.0
        %1098 = vmatprep.subr.mxu0 0.0
        %1099 = vmatpush2.msra.mxu0 0.0
        %1100 = vmatprep.subr.mxu0 0.0
        %1101 = vmatpush2.msra.mxu0 0.0
        %1102 = vmatprep.mubr.f32.mxu0 0.0
        %1103 = vmatmul.mubr.f32.gmra.mxu0 %v1027
        %v1104 = vpop.f32.mrf.mxu0
        %v1105 = vadd.f32 0.0, %v1104
        %v1106 = vpop.f32.mrf.mxu0
        %1107 = vmatprep.mubr.f32.mxu0 0.0
        %1108 = vmatmul.mubr.f32.gmra.mxu0 %v1030
        %v1109 = vpop.f32.mrf.mxu0
        %v1110 = vadd.f32 0.0, %v1109
        %v1111 = vpop.f32.mrf.mxu0
        %1112 = vmatprep.mubr.f32.mxu0 0.0
        %1113 = vmatmul.mubr.f32.gmra.mxu0 %v1033
        %v1114 = vpop.f32.mrf.mxu0
        %v1115 = vadd.f32 0.0, %v1114
        %v1116 = vpop.f32.mrf.mxu0
        %1117 = vmatprep.mubr.f32.mxu0 0.0
        %1118 = vmatmul.mubr.f32.gmra.mxu0 %v1036
        %v1119 = vpop.f32.mrf.mxu0
        %v1120 = vadd.f32 0.0, %v1119
        %v1121 = vpop.f32.mrf.mxu0
        %1122 = vdwg.mxu0
        %v1123 = vmul.f32 %v520, %v1105
        %v1124 = vmul.f32 %v525, %v1110
        %v1125 = vmul.f32 %v530, %v1115
        %v1126 = vmul.f32 %v535, %v1120
        %1127 = vmatprep.subr.mxu0 0.0
        %1128 = vmatpush1.msra.mxu0 %v563
        %1129 = vmatprep.subr.mxu0 0.0
        %1130 = vmatpush1.msra.mxu0 %v562
        %1131 = vmatprep.subr.mxu0 0.0
        %1132 = vmatpush1.msra.mxu0 %v561
        %1133 = vmatprep.subr.mxu0 0.0
        %1134 = vmatpush1.msra.mxu0 %v560
        %1135 = vmatprep.subr.mxu0 0.0
        %1136 = vmatpush1.msra.mxu0 %v559
        %1137 = vmatprep.subr.mxu0 0.0
        %1138 = vmatpush1.msra.mxu0 %v558
        %1139 = vmatprep.subr.mxu0 0.0
        %1140 = vmatpush1.msra.mxu0 %v557
        %1141 = vmatprep.subr.mxu0 0.0
        %1142 = vmatpush1.msra.mxu0 %v556
        %1143 = vmatprep.subr.mxu0 0.0
        %1144 = vmatpush1.msra.mxu0 %v555
        %1145 = vmatprep.subr.mxu0 0.0
        %1146 = vmatpush1.msra.mxu0 %v554
        %1147 = vmatprep.subr.mxu0 0.0
        %1148 = vmatpush1.msra.mxu0 %v553
        %1149 = vmatprep.subr.mxu0 0.0
        %1150 = vmatpush1.msra.mxu0 %v552
        %1151 = vmatprep.subr.mxu0 0.0
        %1152 = vmatpush1.msra.mxu0 %v551
        %1153 = vmatprep.subr.mxu0 0.0
        %1154 = vmatpush1.msra.mxu0 %v550
        %1155 = vmatprep.subr.mxu0 0.0
        %1156 = vmatpush1.msra.mxu0 %v549
        %1157 = vmatprep.subr.mxu0 0.0
        %1158 = vmatpush1.msra.mxu0 %v548
        %1159 = vmatprep.subr.mxu0 0.0
        %1160 = vmatpush2.msra.mxu0 0.0
        %1161 = vmatprep.subr.mxu0 0.0
        %1162 = vmatpush2.msra.mxu0 0.0
        %1163 = vmatprep.subr.mxu0 0.0
        %1164 = vmatpush2.msra.mxu0 0.0
        %1165 = vmatprep.subr.mxu0 0.0
        %1166 = vmatpush2.msra.mxu0 0.0
        %1167 = vmatprep.subr.mxu0 0.0
        %1168 = vmatpush2.msra.mxu0 0.0
        %1169 = vmatprep.subr.mxu0 0.0
        %1170 = vmatpush2.msra.mxu0 0.0
        %1171 = vmatprep.subr.mxu0 0.0
        %1172 = vmatpush2.msra.mxu0 0.0
        %1173 = vmatprep.subr.mxu0 0.0
        %1174 = vmatpush2.msra.mxu0 0.0
        %1175 = vmatprep.subr.mxu0 0.0
        %1176 = vmatpush2.msra.mxu0 0.0
        %1177 = vmatprep.subr.mxu0 0.0
        %1178 = vmatpush2.msra.mxu0 0.0
        %1179 = vmatprep.subr.mxu0 0.0
        %1180 = vmatpush2.msra.mxu0 0.0
        %1181 = vmatprep.subr.mxu0 0.0
        %1182 = vmatpush2.msra.mxu0 0.0
        %1183 = vmatprep.subr.mxu0 0.0
        %1184 = vmatpush2.msra.mxu0 0.0
        %1185 = vmatprep.subr.mxu0 0.0
        %1186 = vmatpush2.msra.mxu0 0.0
        %1187 = vmatprep.subr.mxu0 0.0
        %1188 = vmatpush2.msra.mxu0 0.0
        %1189 = vmatprep.subr.mxu0 0.0
        %1190 = vmatpush2.msra.mxu0 0.0
        %1191 = vmatprep.mubr.f32.mxu0 0.0
        %1192 = vmatmul.mubr.f32.gmra.mxu0 %v1123
        %v1193 = vpop.f32.mrf.mxu0
        %v1194 = vadd.f32 %v697, %v1193
        %v1195 = vpop.f32.mrf.mxu0
        %1196 = vmatprep.mubr.f32.mxu0 0.0
        %1197 = vmatmul.mubr.f32.gmra.mxu0 %v1124
        %v1198 = vpop.f32.mrf.mxu0
        %v1199 = vadd.f32 %v697, %v1198
        %v1200 = vpop.f32.mrf.mxu0
        %1201 = vmatprep.mubr.f32.mxu0 0.0
        %1202 = vmatmul.mubr.f32.gmra.mxu0 %v1125
        %v1203 = vpop.f32.mrf.mxu0
        %v1204 = vadd.f32 %v697, %v1203
        %v1205 = vpop.f32.mrf.mxu0
        %1206 = vmatprep.mubr.f32.mxu0 0.0
        %1207 = vmatmul.mubr.f32.gmra.mxu0 %v1126
        %v1208 = vpop.f32.mrf.mxu0
        %v1209 = vadd.f32 %v697, %v1208
        %v1210 = vpop.f32.mrf.mxu0
        %1211 = vdwg.mxu0
        %1212 = vst [vmem:[%s345 + $0x10] sm:$0xff] %v1194
        %1213 = vst [vmem:[%s345 + $0x50] sm:$0xff] %v1199
        %1214 = vst [vmem:[%s345 + $0x90] sm:$0xff] %v1204
        %1215 = vst [vmem:[%s345 + $0xd0] sm:$0xff] %v1209
        %1216 = vset.pattern.permute.xlu0 3
        %1217 = vperm.xlu0 %1216, %v544
        %v1218 = vpop.permute.xlu0 %1217
        %1219 = vset.pattern.permute.xlu0 3
        %1220 = vperm.xlu0 %1219, %v545
        %v1221 = vpop.permute.xlu0 %1220
        %1222 = vset.pattern.permute.xlu0 3
        %1223 = vperm.xlu0 %1222, %v546
        %v1224 = vpop.permute.xlu0 %1223
        %1225 = vset.pattern.permute.xlu0 3
        %1226 = vperm.xlu0 %1225, %v547
        %v1227 = vpop.permute.xlu0 %1226
        %vm1228 = vcmp.eq.s32.totalorder %v566, %v1218
        %vm1229 = vcmp.eq.s32.totalorder %v566, %v1221
        %vm1230 = vcmp.eq.s32.totalorder %v566, %v1224
        %vm1231 = vcmp.eq.s32.totalorder %v566, %v1227
        %v1232 = vsel %vm1228, 1, 0
        %v1233 = vsel %vm1229, 1, 0
        %v1234 = vsel %vm1230, 1, 0
        %v1235 = vsel %vm1231, 1, 0
        %v1236 = vcvt.s32.f32 %v1232
        %v1237 = vcvt.s32.f32 %v1233
        %v1238 = vcvt.s32.f32 %v1234
        %v1239 = vcvt.s32.f32 %v1235
        %v1241 = vsel %vm591, %v1236, 0
        %v1244 = vsel %vm591, %v1237, 0
        %v1247 = vsel %vm591, %v1238, 0
        %v1250 = vsel %vm591, %v1239, 0
        %1252 = vmatprep.subr.mxu0 0.0
        %1253 = vmatpush1.msra.mxu0 0.0
        %1254 = vmatprep.subr.mxu0 0.0
        %1255 = vmatpush1.msra.mxu0 0.0
        %1256 = vmatprep.subr.mxu0 0.0
        %1257 = vmatpush1.msra.mxu0 0.0
        %1258 = vmatprep.subr.mxu0 0.0
        %1259 = vmatpush1.msra.mxu0 0.0
        %1260 = vmatprep.subr.mxu0 0.0
        %1261 = vmatpush1.msra.mxu0 0.0
        %1262 = vmatprep.subr.mxu0 0.0
        %1263 = vmatpush1.msra.mxu0 0.0
        %1264 = vmatprep.subr.mxu0 0.0
        %1265 = vmatpush1.msra.mxu0 0.0
        %1266 = vmatprep.subr.mxu0 0.0
        %1267 = vmatpush1.msra.mxu0 0.0
        %1268 = vmatprep.subr.mxu0 0.0
        %1269 = vmatpush1.msra.mxu0 0.0
        %1270 = vmatprep.subr.mxu0 0.0
        %1271 = vmatpush1.msra.mxu0 0.0
        %1272 = vmatprep.subr.mxu0 0.0
        %1273 = vmatpush1.msra.mxu0 0.0
        %1274 = vmatprep.subr.mxu0 0.0
        %1275 = vmatpush1.msra.mxu0 0.0
        %1276 = vmatprep.subr.mxu0 0.0
        %1277 = vmatpush1.msra.mxu0 %v535
        %1278 = vmatprep.subr.mxu0 0.0
        %1279 = vmatpush1.msra.mxu0 %v530
        %1280 = vmatprep.subr.mxu0 0.0
        %1281 = vmatpush1.msra.mxu0 %v525
        %1282 = vmatprep.subr.mxu0 0.0
        %1283 = vmatpush1.msra.mxu0 %v520
        %1284 = vmatprep.subr.mxu0 0.0
        %1285 = vmatpush2.msra.mxu0 0.0
        %1286 = vmatprep.subr.mxu0 0.0
        %1287 = vmatpush2.msra.mxu0 0.0
        %1288 = vmatprep.subr.mxu0 0.0
        %1289 = vmatpush2.msra.mxu0 0.0
        %1290 = vmatprep.subr.mxu0 0.0
        %1291 = vmatpush2.msra.mxu0 0.0
        %1292 = vmatprep.subr.mxu0 0.0
        %1293 = vmatpush2.msra.mxu0 0.0
        %1294 = vmatprep.subr.mxu0 0.0
        %1295 = vmatpush2.msra.mxu0 0.0
        %1296 = vmatprep.subr.mxu0 0.0
        %1297 = vmatpush2.msra.mxu0 0.0
        %1298 = vmatprep.subr.mxu0 0.0
        %1299 = vmatpush2.msra.mxu0 0.0
        %1300 = vmatprep.subr.mxu0 0.0
        %1301 = vmatpush2.msra.mxu0 0.0
        %1302 = vmatprep.subr.mxu0 0.0
        %1303 = vmatpush2.msra.mxu0 0.0
        %1304 = vmatprep.subr.mxu0 0.0
        %1305 = vmatpush2.msra.mxu0 0.0
        %1306 = vmatprep.subr.mxu0 0.0
        %1307 = vmatpush2.msra.mxu0 0.0
        %1308 = vmatprep.subr.mxu0 0.0
        %1309 = vmatpush2.msra.mxu0 0.0
        %1310 = vmatprep.subr.mxu0 0.0
        %1311 = vmatpush2.msra.mxu0 0.0
        %1312 = vmatprep.subr.mxu0 0.0
        %1313 = vmatpush2.msra.mxu0 0.0
        %1314 = vmatprep.subr.mxu0 0.0
        %1315 = vmatpush2.msra.mxu0 0.0
        %1316 = vmatprep.mubr.f32.mxu0 0.0
        %1317 = vmatmul.mubr.f32.gmra.mxu0 %v1241
        %v1318 = vpop.f32.mrf.mxu0
        %v1319 = vadd.f32 0.0, %v1318
        %v1320 = vpop.f32.mrf.mxu0
        %1321 = vmatprep.mubr.f32.mxu0 0.0
        %1322 = vmatmul.mubr.f32.gmra.mxu0 %v1244
        %v1323 = vpop.f32.mrf.mxu0
        %v1324 = vadd.f32 0.0, %v1323
        %v1325 = vpop.f32.mrf.mxu0
        %1326 = vmatprep.mubr.f32.mxu0 0.0
        %1327 = vmatmul.mubr.f32.gmra.mxu0 %v1247
        %v1328 = vpop.f32.mrf.mxu0
        %v1329 = vadd.f32 0.0, %v1328
        %v1330 = vpop.f32.mrf.mxu0
        %1331 = vmatprep.mubr.f32.mxu0 0.0
        %1332 = vmatmul.mubr.f32.gmra.mxu0 %v1250
        %v1333 = vpop.f32.mrf.mxu0
        %v1334 = vadd.f32 0.0, %v1333
        %v1335 = vpop.f32.mrf.mxu0
        %1336 = vdwg.mxu0
        %v1337 = vmul.f32 %v520, %v1319
        %v1338 = vmul.f32 %v525, %v1324
        %v1339 = vmul.f32 %v530, %v1329
        %v1340 = vmul.f32 %v535, %v1334
        %1341 = vmatprep.subr.mxu0 0.0
        %1342 = vmatpush1.msra.mxu0 %v563
        %1343 = vmatprep.subr.mxu0 0.0
        %1344 = vmatpush1.msra.mxu0 %v562
        %1345 = vmatprep.subr.mxu0 0.0
        %1346 = vmatpush1.msra.mxu0 %v561
        %1347 = vmatprep.subr.mxu0 0.0
        %1348 = vmatpush1.msra.mxu0 %v560
        %1349 = vmatprep.subr.mxu0 0.0
        %1350 = vmatpush1.msra.mxu0 %v559
        %1351 = vmatprep.subr.mxu0 0.0
        %1352 = vmatpush1.msra.mxu0 %v558
        %1353 = vmatprep.subr.mxu0 0.0
        %1354 = vmatpush1.msra.mxu0 %v557
        %1355 = vmatprep.subr.mxu0 0.0
        %1356 = vmatpush1.msra.mxu0 %v556
        %1357 = vmatprep.subr.mxu0 0.0
        %1358 = vmatpush1.msra.mxu0 %v555
        %1359 = vmatprep.subr.mxu0 0.0
        %1360 = vmatpush1.msra.mxu0 %v554
        %1361 = vmatprep.subr.mxu0 0.0
        %1362 = vmatpush1.msra.mxu0 %v553
        %1363 = vmatprep.subr.mxu0 0.0
        %1364 = vmatpush1.msra.mxu0 %v552
        %1365 = vmatprep.subr.mxu0 0.0
        %1366 = vmatpush1.msra.mxu0 %v551
        %1367 = vmatprep.subr.mxu0 0.0
        %1368 = vmatpush1.msra.mxu0 %v550
        %1369 = vmatprep.subr.mxu0 0.0
        %1370 = vmatpush1.msra.mxu0 %v549
        %1371 = vmatprep.subr.mxu0 0.0
        %1372 = vmatpush1.msra.mxu0 %v548
        %1373 = vmatprep.subr.mxu0 0.0
        %1374 = vmatpush2.msra.mxu0 0.0
        %1375 = vmatprep.subr.mxu0 0.0
        %1376 = vmatpush2.msra.mxu0 0.0
        %1377 = vmatprep.subr.mxu0 0.0
        %1378 = vmatpush2.msra.mxu0 0.0
        %1379 = vmatprep.subr.mxu0 0.0
        %1380 = vmatpush2.msra.mxu0 0.0
        %1381 = vmatprep.subr.mxu0 0.0
        %1382 = vmatpush2.msra.mxu0 0.0
        %1383 = vmatprep.subr.mxu0 0.0
        %1384 = vmatpush2.msra.mxu0 0.0
        %1385 = vmatprep.subr.mxu0 0.0
        %1386 = vmatpush2.msra.mxu0 0.0
        %1387 = vmatprep.subr.mxu0 0.0
        %1388 = vmatpush2.msra.mxu0 0.0
        %1389 = vmatprep.subr.mxu0 0.0
        %1390 = vmatpush2.msra.mxu0 0.0
        %1391 = vmatprep.subr.mxu0 0.0
        %1392 = vmatpush2.msra.mxu0 0.0
        %1393 = vmatprep.subr.mxu0 0.0
        %1394 = vmatpush2.msra.mxu0 0.0
        %1395 = vmatprep.subr.mxu0 0.0
        %1396 = vmatpush2.msra.mxu0 0.0
        %1397 = vmatprep.subr.mxu0 0.0
        %1398 = vmatpush2.msra.mxu0 0.0
        %1399 = vmatprep.subr.mxu0 0.0
        %1400 = vmatpush2.msra.mxu0 0.0
        %1401 = vmatprep.subr.mxu0 0.0
        %1402 = vmatpush2.msra.mxu0 0.0
        %1403 = vmatprep.subr.mxu0 0.0
        %1404 = vmatpush2.msra.mxu0 0.0
        %1405 = vmatprep.mubr.f32.mxu0 0.0
        %1406 = vmatmul.mubr.f32.gmra.mxu0 %v1337
        %v1407 = vpop.f32.mrf.mxu0
        %v1408 = vadd.f32 %v697, %v1407
        %v1409 = vpop.f32.mrf.mxu0
        %1410 = vmatprep.mubr.f32.mxu0 0.0
        %1411 = vmatmul.mubr.f32.gmra.mxu0 %v1338
        %v1412 = vpop.f32.mrf.mxu0
        %v1413 = vadd.f32 %v697, %v1412
        %v1414 = vpop.f32.mrf.mxu0
        %1415 = vmatprep.mubr.f32.mxu0 0.0
        %1416 = vmatmul.mubr.f32.gmra.mxu0 %v1339
        %v1417 = vpop.f32.mrf.mxu0
        %v1418 = vadd.f32 %v697, %v1417
        %v1419 = vpop.f32.mrf.mxu0
        %1420 = vmatprep.mubr.f32.mxu0 0.0
        %1421 = vmatmul.mubr.f32.gmra.mxu0 %v1340
        %v1422 = vpop.f32.mrf.mxu0
        %v1423 = vadd.f32 %v697, %v1422
        %v1424 = vpop.f32.mrf.mxu0
        %1425 = vdwg.mxu0
        %1426 = vst [vmem:[%s345 + $0x18] sm:$0xff] %v1408
        %1427 = vst [vmem:[%s345 + $0x58] sm:$0xff] %v1413
        %1428 = vst [vmem:[%s345 + $0x98] sm:$0xff] %v1418
        %1429 = vst [vmem:[%s345 + $0xd8] sm:$0xff] %v1423
        %1430 = vset.pattern.permute.xlu0 4
        %1431 = vperm.xlu0 %1430, %v544
        %v1432 = vpop.permute.xlu0 %1431
        %1433 = vset.pattern.permute.xlu0 4
        %1434 = vperm.xlu0 %1433, %v545
        %v1435 = vpop.permute.xlu0 %1434
        %1436 = vset.pattern.permute.xlu0 4
        %1437 = vperm.xlu0 %1436, %v546
        %v1438 = vpop.permute.xlu0 %1437
        %1439 = vset.pattern.permute.xlu0 4
        %1440 = vperm.xlu0 %1439, %v547
        %v1441 = vpop.permute.xlu0 %1440
        %vm1442 = vcmp.eq.s32.totalorder %v566, %v1432
        %vm1443 = vcmp.eq.s32.totalorder %v566, %v1435
        %vm1444 = vcmp.eq.s32.totalorder %v566, %v1438
        %vm1445 = vcmp.eq.s32.totalorder %v566, %v1441
        %v1446 = vsel %vm1442, 1, 0
        %v1447 = vsel %vm1443, 1, 0
        %v1448 = vsel %vm1444, 1, 0
        %v1449 = vsel %vm1445, 1, 0
        %v1450 = vcvt.s32.f32 %v1446
        %v1451 = vcvt.s32.f32 %v1447
        %v1452 = vcvt.s32.f32 %v1448
        %v1453 = vcvt.s32.f32 %v1449
        %v1455 = vsel %vm591, %v1450, 0
        %v1458 = vsel %vm591, %v1451, 0
        %v1461 = vsel %vm591, %v1452, 0
        %v1464 = vsel %vm591, %v1453, 0
        %1466 = vmatprep.subr.mxu0 0.0
        %1467 = vmatpush1.msra.mxu0 0.0
        %1468 = vmatprep.subr.mxu0 0.0
        %1469 = vmatpush1.msra.mxu0 0.0
        %1470 = vmatprep.subr.mxu0 0.0
        %1471 = vmatpush1.msra.mxu0 0.0
        %1472 = vmatprep.subr.mxu0 0.0
        %1473 = vmatpush1.msra.mxu0 0.0
        %1474 = vmatprep.subr.mxu0 0.0
        %1475 = vmatpush1.msra.mxu0 0.0
        %1476 = vmatprep.subr.mxu0 0.0
        %1477 = vmatpush1.msra.mxu0 0.0
        %1478 = vmatprep.subr.mxu0 0.0
        %1479 = vmatpush1.msra.mxu0 0.0
        %1480 = vmatprep.subr.mxu0 0.0
        %1481 = vmatpush1.msra.mxu0 0.0
        %1482 = vmatprep.subr.mxu0 0.0
        %1483 = vmatpush1.msra.mxu0 0.0
        %1484 = vmatprep.subr.mxu0 0.0
        %1485 = vmatpush1.msra.mxu0 0.0
        %1486 = vmatprep.subr.mxu0 0.0
        %1487 = vmatpush1.msra.mxu0 0.0
        %1488 = vmatprep.subr.mxu0 0.0
        %1489 = vmatpush1.msra.mxu0 0.0
        %1490 = vmatprep.subr.mxu0 0.0
        %1491 = vmatpush1.msra.mxu0 %v535
        %1492 = vmatprep.subr.mxu0 0.0
        %1493 = vmatpush1.msra.mxu0 %v530
        %1494 = vmatprep.subr.mxu0 0.0
        %1495 = vmatpush1.msra.mxu0 %v525
        %1496 = vmatprep.subr.mxu0 0.0
        %1497 = vmatpush1.msra.mxu0 %v520
        %1498 = vmatprep.subr.mxu0 0.0
        %1499 = vmatpush2.msra.mxu0 0.0
        %1500 = vmatprep.subr.mxu0 0.0
        %1501 = vmatpush2.msra.mxu0 0.0
        %1502 = vmatprep.subr.mxu0 0.0
        %1503 = vmatpush2.msra.mxu0 0.0
        %1504 = vmatprep.subr.mxu0 0.0
        %1505 = vmatpush2.msra.mxu0 0.0
        %1506 = vmatprep.subr.mxu0 0.0
        %1507 = vmatpush2.msra.mxu0 0.0
        %1508 = vmatprep.subr.mxu0 0.0
        %1509 = vmatpush2.msra.mxu0 0.0
        %1510 = vmatprep.subr.mxu0 0.0
        %1511 = vmatpush2.msra.mxu0 0.0
        %1512 = vmatprep.subr.mxu0 0.0
        %1513 = vmatpush2.msra.mxu0 0.0
        %1514 = vmatprep.subr.mxu0 0.0
        %1515 = vmatpush2.msra.mxu0 0.0
        %1516 = vmatprep.subr.mxu0 0.0
        %1517 = vmatpush2.msra.mxu0 0.0
        %1518 = vmatprep.subr.mxu0 0.0
        %1519 = vmatpush2.msra.mxu0 0.0
        %1520 = vmatprep.subr.mxu0 0.0
        %1521 = vmatpush2.msra.mxu0 0.0
        %1522 = vmatprep.subr.mxu0 0.0
        %1523 = vmatpush2.msra.mxu0 0.0
        %1524 = vmatprep.subr.mxu0 0.0
        %1525 = vmatpush2.msra.mxu0 0.0
        %1526 = vmatprep.subr.mxu0 0.0
        %1527 = vmatpush2.msra.mxu0 0.0
        %1528 = vmatprep.subr.mxu0 0.0
        %1529 = vmatpush2.msra.mxu0 0.0
        %1530 = vmatprep.mubr.f32.mxu0 0.0
        %1531 = vmatmul.mubr.f32.gmra.mxu0 %v1455
        %v1532 = vpop.f32.mrf.mxu0
        %v1533 = vadd.f32 0.0, %v1532
        %v1534 = vpop.f32.mrf.mxu0
        %1535 = vmatprep.mubr.f32.mxu0 0.0
        %1536 = vmatmul.mubr.f32.gmra.mxu0 %v1458
        %v1537 = vpop.f32.mrf.mxu0
        %v1538 = vadd.f32 0.0, %v1537
        %v1539 = vpop.f32.mrf.mxu0
        %1540 = vmatprep.mubr.f32.mxu0 0.0
        %1541 = vmatmul.mubr.f32.gmra.mxu0 %v1461
        %v1542 = vpop.f32.mrf.mxu0
        %v1543 = vadd.f32 0.0, %v1542
        %v1544 = vpop.f32.mrf.mxu0
        %1545 = vmatprep.mubr.f32.mxu0 0.0
        %1546 = vmatmul.mubr.f32.gmra.mxu0 %v1464
        %v1547 = vpop.f32.mrf.mxu0
        %v1548 = vadd.f32 0.0, %v1547
        %v1549 = vpop.f32.mrf.mxu0
        %1550 = vdwg.mxu0
        %v1551 = vmul.f32 %v520, %v1533
        %v1552 = vmul.f32 %v525, %v1538
        %v1553 = vmul.f32 %v530, %v1543
        %v1554 = vmul.f32 %v535, %v1548
        %1555 = vmatprep.subr.mxu0 0.0
        %1556 = vmatpush1.msra.mxu0 %v563
        %1557 = vmatprep.subr.mxu0 0.0
        %1558 = vmatpush1.msra.mxu0 %v562
        %1559 = vmatprep.subr.mxu0 0.0
        %1560 = vmatpush1.msra.mxu0 %v561
        %1561 = vmatprep.subr.mxu0 0.0
        %1562 = vmatpush1.msra.mxu0 %v560
        %1563 = vmatprep.subr.mxu0 0.0
        %1564 = vmatpush1.msra.mxu0 %v559
        %1565 = vmatprep.subr.mxu0 0.0
        %1566 = vmatpush1.msra.mxu0 %v558
        %1567 = vmatprep.subr.mxu0 0.0
        %1568 = vmatpush1.msra.mxu0 %v557
        %1569 = vmatprep.subr.mxu0 0.0
        %1570 = vmatpush1.msra.mxu0 %v556
        %1571 = vmatprep.subr.mxu0 0.0
        %1572 = vmatpush1.msra.mxu0 %v555
        %1573 = vmatprep.subr.mxu0 0.0
        %1574 = vmatpush1.msra.mxu0 %v554
        %1575 = vmatprep.subr.mxu0 0.0
        %1576 = vmatpush1.msra.mxu0 %v553
        %1577 = vmatprep.subr.mxu0 0.0
        %1578 = vmatpush1.msra.mxu0 %v552
        %1579 = vmatprep.subr.mxu0 0.0
        %1580 = vmatpush1.msra.mxu0 %v551
        %1581 = vmatprep.subr.mxu0 0.0
        %1582 = vmatpush1.msra.mxu0 %v550
        %1583 = vmatprep.subr.mxu0 0.0
        %1584 = vmatpush1.msra.mxu0 %v549
        %1585 = vmatprep.subr.mxu0 0.0
        %1586 = vmatpush1.msra.mxu0 %v548
        %1587 = vmatprep.subr.mxu0 0.0
        %1588 = vmatpush2.msra.mxu0 0.0
        %1589 = vmatprep.subr.mxu0 0.0
        %1590 = vmatpush2.msra.mxu0 0.0
        %1591 = vmatprep.subr.mxu0 0.0
        %1592 = vmatpush2.msra.mxu0 0.0
        %1593 = vmatprep.subr.mxu0 0.0
        %1594 = vmatpush2.msra.mxu0 0.0
        %1595 = vmatprep.subr.mxu0 0.0
        %1596 = vmatpush2.msra.mxu0 0.0
        %1597 = vmatprep.subr.mxu0 0.0
        %1598 = vmatpush2.msra.mxu0 0.0
        %1599 = vmatprep.subr.mxu0 0.0
        %1600 = vmatpush2.msra.mxu0 0.0
        %1601 = vmatprep.subr.mxu0 0.0
        %1602 = vmatpush2.msra.mxu0 0.0
        %1603 = vmatprep.subr.mxu0 0.0
        %1604 = vmatpush2.msra.mxu0 0.0
        %1605 = vmatprep.subr.mxu0 0.0
        %1606 = vmatpush2.msra.mxu0 0.0
        %1607 = vmatprep.subr.mxu0 0.0
        %1608 = vmatpush2.msra.mxu0 0.0
        %1609 = vmatprep.subr.mxu0 0.0
        %1610 = vmatpush2.msra.mxu0 0.0
        %1611 = vmatprep.subr.mxu0 0.0
        %1612 = vmatpush2.msra.mxu0 0.0
        %1613 = vmatprep.subr.mxu0 0.0
        %1614 = vmatpush2.msra.mxu0 0.0
        %1615 = vmatprep.subr.mxu0 0.0
        %1616 = vmatpush2.msra.mxu0 0.0
        %1617 = vmatprep.subr.mxu0 0.0
        %1618 = vmatpush2.msra.mxu0 0.0
        %1619 = vmatprep.mubr.f32.mxu0 0.0
        %1620 = vmatmul.mubr.f32.gmra.mxu0 %v1551
        %v1621 = vpop.f32.mrf.mxu0
        %v1622 = vadd.f32 %v697, %v1621
        %v1623 = vpop.f32.mrf.mxu0
        %1624 = vmatprep.mubr.f32.mxu0 0.0
        %1625 = vmatmul.mubr.f32.gmra.mxu0 %v1552
        %v1626 = vpop.f32.mrf.mxu0
        %v1627 = vadd.f32 %v697, %v1626
        %v1628 = vpop.f32.mrf.mxu0
        %1629 = vmatprep.mubr.f32.mxu0 0.0
        %1630 = vmatmul.mubr.f32.gmra.mxu0 %v1553
        %v1631 = vpop.f32.mrf.mxu0
        %v1632 = vadd.f32 %v697, %v1631
        %v1633 = vpop.f32.mrf.mxu0
        %1634 = vmatprep.mubr.f32.mxu0 0.0
        %1635 = vmatmul.mubr.f32.gmra.mxu0 %v1554
        %v1636 = vpop.f32.mrf.mxu0
        %v1637 = vadd.f32 %v697, %v1636
        %v1638 = vpop.f32.mrf.mxu0
        %1639 = vdwg.mxu0
        %1640 = vst [vmem:[%s345 + $0x20] sm:$0xff] %v1622
        %1641 = vst [vmem:[%s345 + $0x60] sm:$0xff] %v1627
        %1642 = vst [vmem:[%s345 + $0xa0] sm:$0xff] %v1632
        %1643 = vst [vmem:[%s345 + $0xe0] sm:$0xff] %v1637
        %1644 = vset.pattern.permute.xlu0 5
        %1645 = vperm.xlu0 %1644, %v544
        %v1646 = vpop.permute.xlu0 %1645
        %1647 = vset.pattern.permute.xlu0 5
        %1648 = vperm.xlu0 %1647, %v545
        %v1649 = vpop.permute.xlu0 %1648
        %1650 = vset.pattern.permute.xlu0 5
        %1651 = vperm.xlu0 %1650, %v546
        %v1652 = vpop.permute.xlu0 %1651
        %1653 = vset.pattern.permute.xlu0 5
        %1654 = vperm.xlu0 %1653, %v547
        %v1655 = vpop.permute.xlu0 %1654
        %vm1656 = vcmp.eq.s32.totalorder %v566, %v1646
        %vm1657 = vcmp.eq.s32.totalorder %v566, %v1649
        %vm1658 = vcmp.eq.s32.totalorder %v566, %v1652
        %vm1659 = vcmp.eq.s32.totalorder %v566, %v1655
        %v1660 = vsel %vm1656, 1, 0
        %v1661 = vsel %vm1657, 1, 0
        %v1662 = vsel %vm1658, 1, 0
        %v1663 = vsel %vm1659, 1, 0
        %v1664 = vcvt.s32.f32 %v1660
        %v1665 = vcvt.s32.f32 %v1661
        %v1666 = vcvt.s32.f32 %v1662
        %v1667 = vcvt.s32.f32 %v1663
        %v1669 = vsel %vm591, %v1664, 0
        %v1672 = vsel %vm591, %v1665, 0
        %v1675 = vsel %vm591, %v1666, 0
        %v1678 = vsel %vm591, %v1667, 0
        %1680 = vmatprep.subr.mxu0 0.0
        %1681 = vmatpush1.msra.mxu0 0.0
        %1682 = vmatprep.subr.mxu0 0.0
        %1683 = vmatpush1.msra.mxu0 0.0
        %1684 = vmatprep.subr.mxu0 0.0
        %1685 = vmatpush1.msra.mxu0 0.0
        %1686 = vmatprep.subr.mxu0 0.0
        %1687 = vmatpush1.msra.mxu0 0.0
        %1688 = vmatprep.subr.mxu0 0.0
        %1689 = vmatpush1.msra.mxu0 0.0
        %1690 = vmatprep.subr.mxu0 0.0
        %1691 = vmatpush1.msra.mxu0 0.0
        %1692 = vmatprep.subr.mxu0 0.0
        %1693 = vmatpush1.msra.mxu0 0.0
        %1694 = vmatprep.subr.mxu0 0.0
        %1695 = vmatpush1.msra.mxu0 0.0
        %1696 = vmatprep.subr.mxu0 0.0
        %1697 = vmatpush1.msra.mxu0 0.0
        %1698 = vmatprep.subr.mxu0 0.0
        %1699 = vmatpush1.msra.mxu0 0.0
        %1700 = vmatprep.subr.mxu0 0.0
        %1701 = vmatpush1.msra.mxu0 0.0
        %1702 = vmatprep.subr.mxu0 0.0
        %1703 = vmatpush1.msra.mxu0 0.0
        %1704 = vmatprep.subr.mxu0 0.0
        %1705 = vmatpush1.msra.mxu0 %v535
        %1706 = vmatprep.subr.mxu0 0.0
        %1707 = vmatpush1.msra.mxu0 %v530
        %1708 = vmatprep.subr.mxu0 0.0
        %1709 = vmatpush1.msra.mxu0 %v525
        %1710 = vmatprep.subr.mxu0 0.0
        %1711 = vmatpush1.msra.mxu0 %v520
        %1712 = vmatprep.subr.mxu0 0.0
        %1713 = vmatpush2.msra.mxu0 0.0
        %1714 = vmatprep.subr.mxu0 0.0
        %1715 = vmatpush2.msra.mxu0 0.0
        %1716 = vmatprep.subr.mxu0 0.0
        %1717 = vmatpush2.msra.mxu0 0.0
        %1718 = vmatprep.subr.mxu0 0.0
        %1719 = vmatpush2.msra.mxu0 0.0
        %1720 = vmatprep.subr.mxu0 0.0
        %1721 = vmatpush2.msra.mxu0 0.0
        %1722 = vmatprep.subr.mxu0 0.0
        %1723 = vmatpush2.msra.mxu0 0.0
        %1724 = vmatprep.subr.mxu0 0.0
        %1725 = vmatpush2.msra.mxu0 0.0
        %1726 = vmatprep.subr.mxu0 0.0
        %1727 = vmatpush2.msra.mxu0 0.0
        %1728 = vmatprep.subr.mxu0 0.0
        %1729 = vmatpush2.msra.mxu0 0.0
        %1730 = vmatprep.subr.mxu0 0.0
        %1731 = vmatpush2.msra.mxu0 0.0
        %1732 = vmatprep.subr.mxu0 0.0
        %1733 = vmatpush2.msra.mxu0 0.0
        %1734 = vmatprep.subr.mxu0 0.0
        %1735 = vmatpush2.msra.mxu0 0.0
        %1736 = vmatprep.subr.mxu0 0.0
        %1737 = vmatpush2.msra.mxu0 0.0
        %1738 = vmatprep.subr.mxu0 0.0
        %1739 = vmatpush2.msra.mxu0 0.0
        %1740 = vmatprep.subr.mxu0 0.0
        %1741 = vmatpush2.msra.mxu0 0.0
        %1742 = vmatprep.subr.mxu0 0.0
        %1743 = vmatpush2.msra.mxu0 0.0
        %1744 = vmatprep.mubr.f32.mxu0 0.0
        %1745 = vmatmul.mubr.f32.gmra.mxu0 %v1669
        %v1746 = vpop.f32.mrf.mxu0
        %v1747 = vadd.f32 0.0, %v1746
        %v1748 = vpop.f32.mrf.mxu0
        %1749 = vmatprep.mubr.f32.mxu0 0.0
        %1750 = vmatmul.mubr.f32.gmra.mxu0 %v1672
        %v1751 = vpop.f32.mrf.mxu0
        %v1752 = vadd.f32 0.0, %v1751
        %v1753 = vpop.f32.mrf.mxu0
        %1754 = vmatprep.mubr.f32.mxu0 0.0
        %1755 = vmatmul.mubr.f32.gmra.mxu0 %v1675
        %v1756 = vpop.f32.mrf.mxu0
        %v1757 = vadd.f32 0.0, %v1756
        %v1758 = vpop.f32.mrf.mxu0
        %1759 = vmatprep.mubr.f32.mxu0 0.0
        %1760 = vmatmul.mubr.f32.gmra.mxu0 %v1678
        %v1761 = vpop.f32.mrf.mxu0
        %v1762 = vadd.f32 0.0, %v1761
        %v1763 = vpop.f32.mrf.mxu0
        %1764 = vdwg.mxu0
        %v1765 = vmul.f32 %v520, %v1747
        %v1766 = vmul.f32 %v525, %v1752
        %v1767 = vmul.f32 %v530, %v1757
        %v1768 = vmul.f32 %v535, %v1762
        %1769 = vmatprep.subr.mxu0 0.0
        %1770 = vmatpush1.msra.mxu0 %v563
        %1771 = vmatprep.subr.mxu0 0.0
        %1772 = vmatpush1.msra.mxu0 %v562
        %1773 = vmatprep.subr.mxu0 0.0
        %1774 = vmatpush1.msra.mxu0 %v561
        %1775 = vmatprep.subr.mxu0 0.0
        %1776 = vmatpush1.msra.mxu0 %v560
        %1777 = vmatprep.subr.mxu0 0.0
        %1778 = vmatpush1.msra.mxu0 %v559
        %1779 = vmatprep.subr.mxu0 0.0
        %1780 = vmatpush1.msra.mxu0 %v558
        %1781 = vmatprep.subr.mxu0 0.0
        %1782 = vmatpush1.msra.mxu0 %v557
        %1783 = vmatprep.subr.mxu0 0.0
        %1784 = vmatpush1.msra.mxu0 %v556
        %1785 = vmatprep.subr.mxu0 0.0
        %1786 = vmatpush1.msra.mxu0 %v555
        %1787 = vmatprep.subr.mxu0 0.0
        %1788 = vmatpush1.msra.mxu0 %v554
        %1789 = vmatprep.subr.mxu0 0.0
        %1790 = vmatpush1.msra.mxu0 %v553
        %1791 = vmatprep.subr.mxu0 0.0
        %1792 = vmatpush1.msra.mxu0 %v552
        %1793 = vmatprep.subr.mxu0 0.0
        %1794 = vmatpush1.msra.mxu0 %v551
        %1795 = vmatprep.subr.mxu0 0.0
        %1796 = vmatpush1.msra.mxu0 %v550
        %1797 = vmatprep.subr.mxu0 0.0
        %1798 = vmatpush1.msra.mxu0 %v549
        %1799 = vmatprep.subr.mxu0 0.0
        %1800 = vmatpush1.msra.mxu0 %v548
        %1801 = vmatprep.subr.mxu0 0.0
        %1802 = vmatpush2.msra.mxu0 0.0
        %1803 = vmatprep.subr.mxu0 0.0
        %1804 = vmatpush2.msra.mxu0 0.0
        %1805 = vmatprep.subr.mxu0 0.0
        %1806 = vmatpush2.msra.mxu0 0.0
        %1807 = vmatprep.subr.mxu0 0.0
        %1808 = vmatpush2.msra.mxu0 0.0
        %1809 = vmatprep.subr.mxu0 0.0
        %1810 = vmatpush2.msra.mxu0 0.0
        %1811 = vmatprep.subr.mxu0 0.0
        %1812 = vmatpush2.msra.mxu0 0.0
        %1813 = vmatprep.subr.mxu0 0.0
        %1814 = vmatpush2.msra.mxu0 0.0
        %1815 = vmatprep.subr.mxu0 0.0
        %1816 = vmatpush2.msra.mxu0 0.0
        %1817 = vmatprep.subr.mxu0 0.0
        %1818 = vmatpush2.msra.mxu0 0.0
        %1819 = vmatprep.subr.mxu0 0.0
        %1820 = vmatpush2.msra.mxu0 0.0
        %1821 = vmatprep.subr.mxu0 0.0
        %1822 = vmatpush2.msra.mxu0 0.0
        %1823 = vmatprep.subr.mxu0 0.0
        %1824 = vmatpush2.msra.mxu0 0.0
        %1825 = vmatprep.subr.mxu0 0.0
        %1826 = vmatpush2.msra.mxu0 0.0
        %1827 = vmatprep.subr.mxu0 0.0
        %1828 = vmatpush2.msra.mxu0 0.0
        %1829 = vmatprep.subr.mxu0 0.0
        %1830 = vmatpush2.msra.mxu0 0.0
        %1831 = vmatprep.subr.mxu0 0.0
        %1832 = vmatpush2.msra.mxu0 0.0
        %1833 = vmatprep.mubr.f32.mxu0 0.0
        %1834 = vmatmul.mubr.f32.gmra.mxu0 %v1765
        %v1835 = vpop.f32.mrf.mxu0
        %v1836 = vadd.f32 %v697, %v1835
        %v1837 = vpop.f32.mrf.mxu0
        %1838 = vmatprep.mubr.f32.mxu0 0.0
        %1839 = vmatmul.mubr.f32.gmra.mxu0 %v1766
        %v1840 = vpop.f32.mrf.mxu0
        %v1841 = vadd.f32 %v697, %v1840
        %v1842 = vpop.f32.mrf.mxu0
        %1843 = vmatprep.mubr.f32.mxu0 0.0
        %1844 = vmatmul.mubr.f32.gmra.mxu0 %v1767
        %v1845 = vpop.f32.mrf.mxu0
        %v1846 = vadd.f32 %v697, %v1845
        %v1847 = vpop.f32.mrf.mxu0
        %1848 = vmatprep.mubr.f32.mxu0 0.0
        %1849 = vmatmul.mubr.f32.gmra.mxu0 %v1768
        %v1850 = vpop.f32.mrf.mxu0
        %v1851 = vadd.f32 %v697, %v1850
        %v1852 = vpop.f32.mrf.mxu0
        %1853 = vdwg.mxu0
        %1854 = vst [vmem:[%s345 + $0x28] sm:$0xff] %v1836
        %1855 = vst [vmem:[%s345 + $0x68] sm:$0xff] %v1841
        %1856 = vst [vmem:[%s345 + $0xa8] sm:$0xff] %v1846
        %1857 = vst [vmem:[%s345 + $0xe8] sm:$0xff] %v1851
        %1858 = vset.pattern.permute.xlu0 6
        %1859 = vperm.xlu0 %1858, %v544
        %v1860 = vpop.permute.xlu0 %1859
        %1861 = vset.pattern.permute.xlu0 6
        %1862 = vperm.xlu0 %1861, %v545
        %v1863 = vpop.permute.xlu0 %1862
        %1864 = vset.pattern.permute.xlu0 6
        %1865 = vperm.xlu0 %1864, %v546
        %v1866 = vpop.permute.xlu0 %1865
        %1867 = vset.pattern.permute.xlu0 6
        %1868 = vperm.xlu0 %1867, %v547
        %v1869 = vpop.permute.xlu0 %1868
        %vm1870 = vcmp.eq.s32.totalorder %v566, %v1860
        %vm1871 = vcmp.eq.s32.totalorder %v566, %v1863
        %vm1872 = vcmp.eq.s32.totalorder %v566, %v1866
        %vm1873 = vcmp.eq.s32.totalorder %v566, %v1869
        %v1874 = vsel %vm1870, 1, 0
        %v1875 = vsel %vm1871, 1, 0
        %v1876 = vsel %vm1872, 1, 0
        %v1877 = vsel %vm1873, 1, 0
        %v1878 = vcvt.s32.f32 %v1874
        %v1879 = vcvt.s32.f32 %v1875
        %v1880 = vcvt.s32.f32 %v1876
        %v1881 = vcvt.s32.f32 %v1877
        %v1883 = vsel %vm591, %v1878, 0
        %v1886 = vsel %vm591, %v1879, 0
        %v1889 = vsel %vm591, %v1880, 0
        %v1892 = vsel %vm591, %v1881, 0
        %1894 = vmatprep.subr.mxu0 0.0
        %1895 = vmatpush1.msra.mxu0 0.0
        %1896 = vmatprep.subr.mxu0 0.0
        %1897 = vmatpush1.msra.mxu0 0.0
        %1898 = vmatprep.subr.mxu0 0.0
        %1899 = vmatpush1.msra.mxu0 0.0
        %1900 = vmatprep.subr.mxu0 0.0
        %1901 = vmatpush1.msra.mxu0 0.0
        %1902 = vmatprep.subr.mxu0 0.0
        %1903 = vmatpush1.msra.mxu0 0.0
        %1904 = vmatprep.subr.mxu0 0.0
        %1905 = vmatpush1.msra.mxu0 0.0
        %1906 = vmatprep.subr.mxu0 0.0
        %1907 = vmatpush1.msra.mxu0 0.0
        %1908 = vmatprep.subr.mxu0 0.0
        %1909 = vmatpush1.msra.mxu0 0.0
        %1910 = vmatprep.subr.mxu0 0.0
        %1911 = vmatpush1.msra.mxu0 0.0
        %1912 = vmatprep.subr.mxu0 0.0
        %1913 = vmatpush1.msra.mxu0 0.0
        %1914 = vmatprep.subr.mxu0 0.0
        %1915 = vmatpush1.msra.mxu0 0.0
        %1916 = vmatprep.subr.mxu0 0.0
        %1917 = vmatpush1.msra.mxu0 0.0
        %1918 = vmatprep.subr.mxu0 0.0
        %1919 = vmatpush1.msra.mxu0 %v535
        %1920 = vmatprep.subr.mxu0 0.0
        %1921 = vmatpush1.msra.mxu0 %v530
        %1922 = vmatprep.subr.mxu0 0.0
        %1923 = vmatpush1.msra.mxu0 %v525
        %1924 = vmatprep.subr.mxu0 0.0
        %1925 = vmatpush1.msra.mxu0 %v520
        %1926 = vmatprep.subr.mxu0 0.0
        %1927 = vmatpush2.msra.mxu0 0.0
        %1928 = vmatprep.subr.mxu0 0.0
        %1929 = vmatpush2.msra.mxu0 0.0
        %1930 = vmatprep.subr.mxu0 0.0
        %1931 = vmatpush2.msra.mxu0 0.0
        %1932 = vmatprep.subr.mxu0 0.0
        %1933 = vmatpush2.msra.mxu0 0.0
        %1934 = vmatprep.subr.mxu0 0.0
        %1935 = vmatpush2.msra.mxu0 0.0
        %1936 = vmatprep.subr.mxu0 0.0
        %1937 = vmatpush2.msra.mxu0 0.0
        %1938 = vmatprep.subr.mxu0 0.0
        %1939 = vmatpush2.msra.mxu0 0.0
        %1940 = vmatprep.subr.mxu0 0.0
        %1941 = vmatpush2.msra.mxu0 0.0
        %1942 = vmatprep.subr.mxu0 0.0
        %1943 = vmatpush2.msra.mxu0 0.0
        %1944 = vmatprep.subr.mxu0 0.0
        %1945 = vmatpush2.msra.mxu0 0.0
        %1946 = vmatprep.subr.mxu0 0.0
        %1947 = vmatpush2.msra.mxu0 0.0
        %1948 = vmatprep.subr.mxu0 0.0
        %1949 = vmatpush2.msra.mxu0 0.0
        %1950 = vmatprep.subr.mxu0 0.0
        %1951 = vmatpush2.msra.mxu0 0.0
        %1952 = vmatprep.subr.mxu0 0.0
        %1953 = vmatpush2.msra.mxu0 0.0
        %1954 = vmatprep.subr.mxu0 0.0
        %1955 = vmatpush2.msra.mxu0 0.0
        %1956 = vmatprep.subr.mxu0 0.0
        %1957 = vmatpush2.msra.mxu0 0.0
        %1958 = vmatprep.mubr.f32.mxu0 0.0
        %1959 = vmatmul.mubr.f32.gmra.mxu0 %v1883
        %v1960 = vpop.f32.mrf.mxu0
        %v1961 = vadd.f32 0.0, %v1960
        %v1962 = vpop.f32.mrf.mxu0
        %1963 = vmatprep.mubr.f32.mxu0 0.0
        %1964 = vmatmul.mubr.f32.gmra.mxu0 %v1886
        %v1965 = vpop.f32.mrf.mxu0
        %v1966 = vadd.f32 0.0, %v1965
        %v1967 = vpop.f32.mrf.mxu0
        %1968 = vmatprep.mubr.f32.mxu0 0.0
        %1969 = vmatmul.mubr.f32.gmra.mxu0 %v1889
        %v1970 = vpop.f32.mrf.mxu0
        %v1971 = vadd.f32 0.0, %v1970
        %v1972 = vpop.f32.mrf.mxu0
        %1973 = vmatprep.mubr.f32.mxu0 0.0
        %1974 = vmatmul.mubr.f32.gmra.mxu0 %v1892
        %v1975 = vpop.f32.mrf.mxu0
        %v1976 = vadd.f32 0.0, %v1975
        %v1977 = vpop.f32.mrf.mxu0
        %1978 = vdwg.mxu0
        %v1979 = vmul.f32 %v520, %v1961
        %v1980 = vmul.f32 %v525, %v1966
        %v1981 = vmul.f32 %v530, %v1971
        %v1982 = vmul.f32 %v535, %v1976
        %1983 = vmatprep.subr.mxu0 0.0
        %1984 = vmatpush1.msra.mxu0 %v563
        %1985 = vmatprep.subr.mxu0 0.0
        %1986 = vmatpush1.msra.mxu0 %v562
        %1987 = vmatprep.subr.mxu0 0.0
        %1988 = vmatpush1.msra.mxu0 %v561
        %1989 = vmatprep.subr.mxu0 0.0
        %1990 = vmatpush1.msra.mxu0 %v560
        %1991 = vmatprep.subr.mxu0 0.0
        %1992 = vmatpush1.msra.mxu0 %v559
        %1993 = vmatprep.subr.mxu0 0.0
        %1994 = vmatpush1.msra.mxu0 %v558
        %1995 = vmatprep.subr.mxu0 0.0
        %1996 = vmatpush1.msra.mxu0 %v557
        %1997 = vmatprep.subr.mxu0 0.0
        %1998 = vmatpush1.msra.mxu0 %v556
        %1999 = vmatprep.subr.mxu0 0.0
        %2000 = vmatpush1.msra.mxu0 %v555
        %2001 = vmatprep.subr.mxu0 0.0
        %2002 = vmatpush1.msra.mxu0 %v554
        %2003 = vmatprep.subr.mxu0 0.0
        %2004 = vmatpush1.msra.mxu0 %v553
        %2005 = vmatprep.subr.mxu0 0.0
        %2006 = vmatpush1.msra.mxu0 %v552
        %2007 = vmatprep.subr.mxu0 0.0
        %2008 = vmatpush1.msra.mxu0 %v551
        %2009 = vmatprep.subr.mxu0 0.0
        %2010 = vmatpush1.msra.mxu0 %v550
        %2011 = vmatprep.subr.mxu0 0.0
        %2012 = vmatpush1.msra.mxu0 %v549
        %2013 = vmatprep.subr.mxu0 0.0
        %2014 = vmatpush1.msra.mxu0 %v548
        %2015 = vmatprep.subr.mxu0 0.0
        %2016 = vmatpush2.msra.mxu0 0.0
        %2017 = vmatprep.subr.mxu0 0.0
        %2018 = vmatpush2.msra.mxu0 0.0
        %2019 = vmatprep.subr.mxu0 0.0
        %2020 = vmatpush2.msra.mxu0 0.0
        %2021 = vmatprep.subr.mxu0 0.0
        %2022 = vmatpush2.msra.mxu0 0.0
        %2023 = vmatprep.subr.mxu0 0.0
        %2024 = vmatpush2.msra.mxu0 0.0
        %2025 = vmatprep.subr.mxu0 0.0
        %2026 = vmatpush2.msra.mxu0 0.0
        %2027 = vmatprep.subr.mxu0 0.0
        %2028 = vmatpush2.msra.mxu0 0.0
        %2029 = vmatprep.subr.mxu0 0.0
        %2030 = vmatpush2.msra.mxu0 0.0
        %2031 = vmatprep.subr.mxu0 0.0
        %2032 = vmatpush2.msra.mxu0 0.0
        %2033 = vmatprep.subr.mxu0 0.0
        %2034 = vmatpush2.msra.mxu0 0.0
        %2035 = vmatprep.subr.mxu0 0.0
        %2036 = vmatpush2.msra.mxu0 0.0
        %2037 = vmatprep.subr.mxu0 0.0
        %2038 = vmatpush2.msra.mxu0 0.0
        %2039 = vmatprep.subr.mxu0 0.0
        %2040 = vmatpush2.msra.mxu0 0.0
        %2041 = vmatprep.subr.mxu0 0.0
        %2042 = vmatpush2.msra.mxu0 0.0
        %2043 = vmatprep.subr.mxu0 0.0
        %2044 = vmatpush2.msra.mxu0 0.0
        %2045 = vmatprep.subr.mxu0 0.0
        %2046 = vmatpush2.msra.mxu0 0.0
        %2047 = vmatprep.mubr.f32.mxu0 0.0
        %2048 = vmatmul.mubr.f32.gmra.mxu0 %v1979
        %v2049 = vpop.f32.mrf.mxu0
        %v2050 = vadd.f32 %v697, %v2049
        %v2051 = vpop.f32.mrf.mxu0
        %2052 = vmatprep.mubr.f32.mxu0 0.0
        %2053 = vmatmul.mubr.f32.gmra.mxu0 %v1980
        %v2054 = vpop.f32.mrf.mxu0
        %v2055 = vadd.f32 %v697, %v2054
        %v2056 = vpop.f32.mrf.mxu0
        %2057 = vmatprep.mubr.f32.mxu0 0.0
        %2058 = vmatmul.mubr.f32.gmra.mxu0 %v1981
        %v2059 = vpop.f32.mrf.mxu0
        %v2060 = vadd.f32 %v697, %v2059
        %v2061 = vpop.f32.mrf.mxu0
        %2062 = vmatprep.mubr.f32.mxu0 0.0
        %2063 = vmatmul.mubr.f32.gmra.mxu0 %v1982
        %v2064 = vpop.f32.mrf.mxu0
        %v2065 = vadd.f32 %v697, %v2064
        %v2066 = vpop.f32.mrf.mxu0
        %2067 = vdwg.mxu0
        %2068 = vst [vmem:[%s345 + $0x30] sm:$0xff] %v2050
        %2069 = vst [vmem:[%s345 + $0x70] sm:$0xff] %v2055
        %2070 = vst [vmem:[%s345 + $0xb0] sm:$0xff] %v2060
        %2071 = vst [vmem:[%s345 + $0xf0] sm:$0xff] %v2065
        %2072 = vset.pattern.permute.xlu0 7
        %2073 = vperm.xlu0 %2072, %v544
        %v2074 = vpop.permute.xlu0 %2073
        %2075 = vset.pattern.permute.xlu0 7
        %2076 = vperm.xlu0 %2075, %v545
        %v2077 = vpop.permute.xlu0 %2076
        %2078 = vset.pattern.permute.xlu0 7
        %2079 = vperm.xlu0 %2078, %v546
        %v2080 = vpop.permute.xlu0 %2079
        %2081 = vset.pattern.permute.xlu0 7
        %2082 = vperm.xlu0 %2081, %v547
        %v2083 = vpop.permute.xlu0 %2082
        %vm2084 = vcmp.eq.s32.totalorder %v566, %v2074
        %vm2085 = vcmp.eq.s32.totalorder %v566, %v2077
        %vm2086 = vcmp.eq.s32.totalorder %v566, %v2080
        %vm2087 = vcmp.eq.s32.totalorder %v566, %v2083
        %v2088 = vsel %vm2084, 1, 0
        %v2089 = vsel %vm2085, 1, 0
        %v2090 = vsel %vm2086, 1, 0
        %v2091 = vsel %vm2087, 1, 0
        %v2092 = vcvt.s32.f32 %v2088
        %v2093 = vcvt.s32.f32 %v2089
        %v2094 = vcvt.s32.f32 %v2090
        %v2095 = vcvt.s32.f32 %v2091
        %v2097 = vsel %vm591, %v2092, 0
        %v2100 = vsel %vm591, %v2093, 0
        %v2103 = vsel %vm591, %v2094, 0
        %v2106 = vsel %vm591, %v2095, 0
        %2108 = vmatprep.subr.mxu0 0.0
        %2109 = vmatpush1.msra.mxu0 0.0
        %2110 = vmatprep.subr.mxu0 0.0
        %2111 = vmatpush1.msra.mxu0 0.0
        %2112 = vmatprep.subr.mxu0 0.0
        %2113 = vmatpush1.msra.mxu0 0.0
        %2114 = vmatprep.subr.mxu0 0.0
        %2115 = vmatpush1.msra.mxu0 0.0
        %2116 = vmatprep.subr.mxu0 0.0
        %2117 = vmatpush1.msra.mxu0 0.0
        %2118 = vmatprep.subr.mxu0 0.0
        %2119 = vmatpush1.msra.mxu0 0.0
        %2120 = vmatprep.subr.mxu0 0.0
        %2121 = vmatpush1.msra.mxu0 0.0
        %2122 = vmatprep.subr.mxu0 0.0
        %2123 = vmatpush1.msra.mxu0 0.0
        %2124 = vmatprep.subr.mxu0 0.0
        %2125 = vmatpush1.msra.mxu0 0.0
        %2126 = vmatprep.subr.mxu0 0.0
        %2127 = vmatpush1.msra.mxu0 0.0
        %2128 = vmatprep.subr.mxu0 0.0
        %2129 = vmatpush1.msra.mxu0 0.0
        %2130 = vmatprep.subr.mxu0 0.0
        %2131 = vmatpush1.msra.mxu0 0.0
        %2132 = vmatprep.subr.mxu0 0.0
        %2133 = vmatpush1.msra.mxu0 %v535
        %2134 = vmatprep.subr.mxu0 0.0
        %2135 = vmatpush1.msra.mxu0 %v530
        %2136 = vmatprep.subr.mxu0 0.0
        %2137 = vmatpush1.msra.mxu0 %v525
        %2138 = vmatprep.subr.mxu0 0.0
        %2139 = vmatpush1.msra.mxu0 %v520
        %2140 = vmatprep.subr.mxu0 0.0
        %2141 = vmatpush2.msra.mxu0 0.0
        %2142 = vmatprep.subr.mxu0 0.0
        %2143 = vmatpush2.msra.mxu0 0.0
        %2144 = vmatprep.subr.mxu0 0.0
        %2145 = vmatpush2.msra.mxu0 0.0
        %2146 = vmatprep.subr.mxu0 0.0
        %2147 = vmatpush2.msra.mxu0 0.0
        %2148 = vmatprep.subr.mxu0 0.0
        %2149 = vmatpush2.msra.mxu0 0.0
        %2150 = vmatprep.subr.mxu0 0.0
        %2151 = vmatpush2.msra.mxu0 0.0
        %2152 = vmatprep.subr.mxu0 0.0
        %2153 = vmatpush2.msra.mxu0 0.0
        %2154 = vmatprep.subr.mxu0 0.0
        %2155 = vmatpush2.msra.mxu0 0.0
        %2156 = vmatprep.subr.mxu0 0.0
        %2157 = vmatpush2.msra.mxu0 0.0
        %2158 = vmatprep.subr.mxu0 0.0
        %2159 = vmatpush2.msra.mxu0 0.0
        %2160 = vmatprep.subr.mxu0 0.0
        %2161 = vmatpush2.msra.mxu0 0.0
        %2162 = vmatprep.subr.mxu0 0.0
        %2163 = vmatpush2.msra.mxu0 0.0
        %2164 = vmatprep.subr.mxu0 0.0
        %2165 = vmatpush2.msra.mxu0 0.0
        %2166 = vmatprep.subr.mxu0 0.0
        %2167 = vmatpush2.msra.mxu0 0.0
        %2168 = vmatprep.subr.mxu0 0.0
        %2169 = vmatpush2.msra.mxu0 0.0
        %2170 = vmatprep.subr.mxu0 0.0
        %2171 = vmatpush2.msra.mxu0 0.0
        %2172 = vmatprep.mubr.f32.mxu0 0.0
        %2173 = vmatmul.mubr.f32.gmra.mxu0 %v2097
        %v2174 = vpop.f32.mrf.mxu0
        %v2175 = vadd.f32 0.0, %v2174
        %v2176 = vpop.f32.mrf.mxu0
        %2177 = vmatprep.mubr.f32.mxu0 0.0
        %2178 = vmatmul.mubr.f32.gmra.mxu0 %v2100
        %v2179 = vpop.f32.mrf.mxu0
        %v2180 = vadd.f32 0.0, %v2179
        %v2181 = vpop.f32.mrf.mxu0
        %2182 = vmatprep.mubr.f32.mxu0 0.0
        %2183 = vmatmul.mubr.f32.gmra.mxu0 %v2103
        %v2184 = vpop.f32.mrf.mxu0
        %v2185 = vadd.f32 0.0, %v2184
        %v2186 = vpop.f32.mrf.mxu0
        %2187 = vmatprep.mubr.f32.mxu0 0.0
        %2188 = vmatmul.mubr.f32.gmra.mxu0 %v2106
        %v2189 = vpop.f32.mrf.mxu0
        %v2190 = vadd.f32 0.0, %v2189
        %v2191 = vpop.f32.mrf.mxu0
        %2192 = vdwg.mxu0
        %v2193 = vmul.f32 %v520, %v2175
        %v2194 = vmul.f32 %v525, %v2180
        %v2195 = vmul.f32 %v530, %v2185
        %v2196 = vmul.f32 %v535, %v2190
        %2197 = vmatprep.subr.mxu0 0.0
        %2198 = vmatpush1.msra.mxu0 %v563
        %2199 = vmatprep.subr.mxu0 0.0
        %2200 = vmatpush1.msra.mxu0 %v562
        %2201 = vmatprep.subr.mxu0 0.0
        %2202 = vmatpush1.msra.mxu0 %v561
        %2203 = vmatprep.subr.mxu0 0.0
        %2204 = vmatpush1.msra.mxu0 %v560
        %2205 = vmatprep.subr.mxu0 0.0
        %2206 = vmatpush1.msra.mxu0 %v559
        %2207 = vmatprep.subr.mxu0 0.0
        %2208 = vmatpush1.msra.mxu0 %v558
        %2209 = vmatprep.subr.mxu0 0.0
        %2210 = vmatpush1.msra.mxu0 %v557
        %2211 = vmatprep.subr.mxu0 0.0
        %2212 = vmatpush1.msra.mxu0 %v556
        %2213 = vmatprep.subr.mxu0 0.0
        %2214 = vmatpush1.msra.mxu0 %v555
        %2215 = vmatprep.subr.mxu0 0.0
        %2216 = vmatpush1.msra.mxu0 %v554
        %2217 = vmatprep.subr.mxu0 0.0
        %2218 = vmatpush1.msra.mxu0 %v553
        %2219 = vmatprep.subr.mxu0 0.0
        %2220 = vmatpush1.msra.mxu0 %v552
        %2221 = vmatprep.subr.mxu0 0.0
        %2222 = vmatpush1.msra.mxu0 %v551
        %2223 = vmatprep.subr.mxu0 0.0
        %2224 = vmatpush1.msra.mxu0 %v550
        %2225 = vmatprep.subr.mxu0 0.0
        %2226 = vmatpush1.msra.mxu0 %v549
        %2227 = vmatprep.subr.mxu0 0.0
        %2228 = vmatpush1.msra.mxu0 %v548
        %2229 = vmatprep.subr.mxu0 0.0
        %2230 = vmatpush2.msra.mxu0 0.0
        %2231 = vmatprep.subr.mxu0 0.0
        %2232 = vmatpush2.msra.mxu0 0.0
        %2233 = vmatprep.subr.mxu0 0.0
        %2234 = vmatpush2.msra.mxu0 0.0
        %2235 = vmatprep.subr.mxu0 0.0
        %2236 = vmatpush2.msra.mxu0 0.0
        %2237 = vmatprep.subr.mxu0 0.0
        %2238 = vmatpush2.msra.mxu0 0.0
        %2239 = vmatprep.subr.mxu0 0.0
        %2240 = vmatpush2.msra.mxu0 0.0
        %2241 = vmatprep.subr.mxu0 0.0
        %2242 = vmatpush2.msra.mxu0 0.0
        %2243 = vmatprep.subr.mxu0 0.0
        %2244 = vmatpush2.msra.mxu0 0.0
        %2245 = vmatprep.subr.mxu0 0.0
        %2246 = vmatpush2.msra.mxu0 0.0
        %2247 = vmatprep.subr.mxu0 0.0
        %2248 = vmatpush2.msra.mxu0 0.0
        %2249 = vmatprep.subr.mxu0 0.0
        %2250 = vmatpush2.msra.mxu0 0.0
        %2251 = vmatprep.subr.mxu0 0.0
        %2252 = vmatpush2.msra.mxu0 0.0
        %2253 = vmatprep.subr.mxu0 0.0
        %2254 = vmatpush2.msra.mxu0 0.0
        %2255 = vmatprep.subr.mxu0 0.0
        %2256 = vmatpush2.msra.mxu0 0.0
        %2257 = vmatprep.subr.mxu0 0.0
        %2258 = vmatpush2.msra.mxu0 0.0
        %2259 = vmatprep.subr.mxu0 0.0
        %2260 = vmatpush2.msra.mxu0 0.0
        %2261 = vmatprep.mubr.f32.mxu0 0.0
        %2262 = vmatmul.mubr.f32.gmra.mxu0 %v2193
        %v2263 = vpop.f32.mrf.mxu0
        %v2264 = vadd.f32 %v697, %v2263
        %v2265 = vpop.f32.mrf.mxu0
        %2266 = vmatprep.mubr.f32.mxu0 0.0
        %2267 = vmatmul.mubr.f32.gmra.mxu0 %v2194
        %v2268 = vpop.f32.mrf.mxu0
        %v2269 = vadd.f32 %v697, %v2268
        %v2270 = vpop.f32.mrf.mxu0
        %2271 = vmatprep.mubr.f32.mxu0 0.0
        %2272 = vmatmul.mubr.f32.gmra.mxu0 %v2195
        %v2273 = vpop.f32.mrf.mxu0
        %v2274 = vadd.f32 %v697, %v2273
        %v2275 = vpop.f32.mrf.mxu0
        %2276 = vmatprep.mubr.f32.mxu0 0.0
        %2277 = vmatmul.mubr.f32.gmra.mxu0 %v2196
        %v2278 = vpop.f32.mrf.mxu0
        %v2279 = vadd.f32 %v697, %v2278
        %v2280 = vpop.f32.mrf.mxu0
        %2281 = vdwg.mxu0
        %2282 = vst [vmem:[%s345 + $0x38] sm:$0xff] %v2264
        %2283 = vst [vmem:[%s345 + $0x78] sm:$0xff] %v2269
        %2284 = vst [vmem:[%s345 + $0xb8] sm:$0xff] %v2274
        %2285 = vst [vmem:[%s345 + $0xf8] sm:$0xff] %v2279
        %s2286 = sand.u32 %s210, 1
        %s2287 = scalar_lea.sflag [#allocation4], %s2286
        %s2288 = sand.u32 %s210, 1
        %s2289 = smul.addr %s2288, 256
        %s2290 = scalar_lea.vmem [#allocation7], %s2289
        // Predicated region
        $region61: #{tpu_custom_call.1} parent=51 // pred_check
          %p2291 = pneg %p220
        $region62: #{tpu_custom_call.1} parent=51 // pred_check_branch
          %2293 = sbr.rel (%p2291) target = $region64
        $region63: #{tpu_custom_call.1} parent=51 // pred_region
          %s2294 = smul.u32 4, %s24
          %s2296 = ssub.s32 4096, 4096
          %2297 = vsyncadd %s2287, %s2296
          %s2298 = smul.addr %s2294, 8
          %s2299 = smul.addr %s2298, 128
          %s2300 = scalar_lea.hbm %s8, %s2299
          %s2301 = sshll.u32 %s2290, 4
          %s2302 = int_to_ptr.vmem [resolvable:$true] %s2301
          %2307 = dma.vmem_to_hbm [thread:$0]  %s2302, 4096, %s2300, %s2287, 1024, 1024, 64
        $region64: #{tpu_custom_call.1} parent=51 // pred_fallthru
          _
      $region52: #{tpu_custom_call.1} parent=5 // pred_fallthru
        _
      %p2308 = scmp.le.s32.totalorder 2, %s19
      // Predicated region
      $region65: #{tpu_custom_call.1} parent=5 // pred_check
        %p2309 = pneg %p2308
      $region66: #{tpu_custom_call.1} parent=5 // pred_check_branch
        %2311 = sbr.rel (%p2309) target = $region68
      $region67: #{tpu_custom_call.1} parent=5 // pred_region
        %s2312 = ssub.s32 %s19, 2
        // Predicated region
        $region69: #{tpu_custom_call.1} parent=67 // pred_check
          %p2313 = pneg %p226
        $region70: #{tpu_custom_call.1} parent=67 // pred_check_branch
          %2315 = sbr.rel (%p2313) target = $region72
        $region71: #{tpu_custom_call.1} parent=67 // pred_region
          %s2316 = sand.u32 %s211, 1
          %s2317 = scalar_lea.sflag [#allocation4], %s2316
          %s2318 = sand.u32 %s211, 1
          %s2319 = smul.addr %s2318, 256
          %s2320 = scalar_lea.vmem [#allocation7], %s2319
          %2321 = dma.done %s2317, 4096
        $region72: #{tpu_custom_call.1} parent=67 // pred_fallthru
          _
      $region68: #{tpu_custom_call.1} parent=5 // pred_fallthru
        _
    $region6: #{tpu_custom_call.1} parent=1 // loop_footer
      %s23 = sadd.s32 1, %s19
    $region7: #{tpu_custom_call.1} parent=1 // loop_footer_branch
      %18 = sbr.rel target = $region3
    $region8: #{tpu_custom_call.1} parent=1 // loop_exit
      _
    %2322 = vsyncpa [#allocation3], 1
    %s2323 = scalar_lea.sflag [#allocation3], 1
    %2324 = vsyncpa %s2323, 1
    %2325 = vsyncpa [#allocation6], 1
    %2326 = vsyncpa [#allocation4], 1
    %s2327 = scalar_lea.sflag [#allocation4], 1
    %2328 = vsyncpa %s2327, 1

</llo_original>
